<compile_context>
chip_gen: v5e
topology: v5e:2x2
jax: 0.10.0
libtpu: 0.0.40
codegen_flags: <defaults>
</compile_context>

<pallas_src>
import jax
import jax.numpy as jnp
import numpy as np
from jax import lax
from jax.experimental import pallas as pl
from jax.experimental.pallas import tpu as pltpu


# --------------------------------------------------------------------------
# Single fused kernel: embedding gather + bidirectional GRU + head/tail MLP
#                      + bi-affine scores, all VMEM-resident, no grid.
# --------------------------------------------------------------------------
def _parser_fused_kernel(widx_ref, pidx_ref,
                         gwf_ref, gpf_ref, gwb_ref, gpb_ref,
                         whhf_ref, bhhf_ref, whhb_ref, bhhb_ref,
                         wht_ref, mtop_ref, mbias_ref,
                         out_ref, hm_ref, tail_ref):
    # widx/pidx : (T*Bp, 1) int32   time-major, batch padded to 8 sublanes
    # gw*/gp*   : (Vw, 3H)/(Vp, 3H) embedding tables pre-composed with W_ih
    #             (forward tables also carry b_ih)
    # whh*/bhh* : (H, 3H) / (1, 3H) per-direction recurrent params
    # wht_ref   : (2H, 2S)  [W_head | W_tail] (pre-transposed, no bias)
    # mtop/mbias: (S, S) / (1, S)   biaffine middle matrix split
    # out_ref   : (B, T, 128)       lane-dense score slab (cols [0:T] valid)
    # hm/tail   : (T*Bp, S) f32 scratch
    B_out, T, LANES = out_ref.shape
    TB, S = hm_ref.shape
    Bp = TB // T
    H = whhf_ref.shape[0]
    Vw = gwf_ref.shape[0]
    Vp = gpf_ref.shape[0]
    f32 = jnp.float32

    # ---- fused embedding gather: one-hot matmuls against pre-composed tables
    oh_w = (lax.broadcasted_iota(jnp.int32, (TB, Vw), 1)
            == widx_ref[...]).astype(f32)                       # (TB, Vw)
    oh_p = (lax.broadcasted_iota(jnp.int32, (TB, Vp), 1)
            == pidx_ref[...]).astype(f32)                       # (TB, Vp)

    # gate inputs for all timesteps, one direction per dot (96 lanes, no
    # 128-lane tile crossing); b_ih already folded into the word tables.
    gi_f = (jnp.dot(oh_w, gwf_ref[...], preferred_element_type=f32)
            + jnp.dot(oh_p, gpf_ref[...], preferred_element_type=f32))  # (TB, 3H)
    gi_b = (jnp.dot(oh_w, gwb_ref[...], preferred_element_type=f32)
            + jnp.dot(oh_p, gpb_ref[...], preferred_element_type=f32))  # (TB, 3H)

    whh_f = whhf_ref[...]
    bhh_f = bhhf_ref[...]
    whh_b = whhb_ref[...]
    bhh_b = bhhb_ref[...]

    def gru_gates(gi_t, gh_t, h_prev):
        # PyTorch GRU gate order: [r, z, n]
        r = jax.nn.sigmoid(gi_t[:, 0:H] + gh_t[:, 0:H])
        z = jax.nn.sigmoid(gi_t[:, H:2 * H] + gh_t[:, H:2 * H])
        n = jnp.tanh(gi_t[:, 2 * H:3 * H] + r * gh_t[:, 2 * H:3 * H])
        return (1.0 - z) * n + z * h_prev

    # ---- fused fwd/bwd recurrence; all slices are 8-sublane-tile aligned
    h_f = jnp.zeros((Bp, H), f32)
    h_b = jnp.zeros((Bp, H), f32)
    fwd_rows = [None] * T
    bwd_rows = [None] * T
    for t in range(T):                     # T is small and static
        rt = T - 1 - t
        gh_f = jnp.dot(h_f, whh_f, preferred_element_type=f32) + bhh_f
        gh_b = jnp.dot(h_b, whh_b, preferred_element_type=f32) + bhh_b
        h_f = gru_gates(gi_f[t * Bp:(t + 1) * Bp, :], gh_f, h_f)
        h_b = gru_gates(gi_b[rt * Bp:(rt + 1) * Bp, :], gh_b, h_b)
        fwd_rows[t] = h_f
        bwd_rows[rt] = h_b

    # time-major hidden slabs: tile-aligned sublane concats only
    fwd_all = jnp.concatenate(fwd_rows, axis=0)    # (TB, H), row = t*Bp + b
    bwd_all = jnp.concatenate(bwd_rows, axis=0)    # (TB, H)

    # ---- batched head/tail MLP: rep @ [W_head|W_tail] without a lane concat
    ht = jnp.maximum(
        jnp.dot(fwd_all, wht_ref[0:H, :], preferred_element_type=f32)
        + jnp.dot(bwd_all, wht_ref[H:2 * H, :], preferred_element_type=f32),
        0.0)                                       # (TB, 2S)

    # ---- biaffine left matmul, batched over all rows
    #      (ones column of biased_head folded into the M_bias row)
    hm_ref[...] = (jnp.dot(ht[:, 0:S], mtop_ref[...],
                           preferred_element_type=f32) + mbias_ref[...])
    tail_ref[...] = ht[:, S:2 * S]

    # ---- per-sentence (T,S)x(S,T) product; strided sublane reads from scratch
    zeros_pad = jnp.zeros((T, LANES - T), f32)
    for b in range(B_out):
        hm_b = hm_ref[pl.ds(b, T, stride=Bp), :]     # (T, S)
        tl_b = tail_ref[pl.ds(b, T, stride=Bp), :]   # (T, S)
        sc = lax.dot_general(hm_b, tl_b, (((1,), (1,)), ((), ())),
                             preferred_element_type=f32)         # (T, T)
        out_ref[b] = jnp.concatenate([sc, zeros_pad], axis=1)    # lane-dense


# --------------------------------------------------------------------------
# Parameter container + forward (glue in plain JAX, fully jitted)
# --------------------------------------------------------------------------
def _uniform(key, shape, bound):
    return jax.random.uniform(key, shape, jnp.float32, -bound, bound)


class PallasParser:
    def __init__(self, key,
                 word_vocab_size=50, word_emb_size=16,
                 pos_vocab_size=10, pos_emb_size=8,
                 base_rnn_hidden_size=32, transformed_size=32):
        self.word_vocab_size = word_vocab_size
        self.pos_vocab_size = pos_vocab_size
        We, Pe = word_emb_size, pos_emb_size
        E = We + Pe
        H = base_rnn_hidden_size
        D = 2 * H                       # joint_size (BI_ONLY, caps OFF)
        S = transformed_size
        self.E, self.H, self.D, self.S = E, H, D, S

        ks = jax.random.split(key, 13)
        self.word_emb = jax.random.normal(ks[0], (word_vocab_size, We), jnp.float32)
        self.pos_emb = jax.random.normal(ks[1], (pos_vocab_size, Pe), jnp.float32)

        bH = 1.0 / float(np.sqrt(H))
        # bidirectional single-layer GRU, weights pre-transposed to (in, 3H)
        self.wih_f = _uniform(ks[2], (E, 3 * H), bH)
        self.whh_f = _uniform(ks[3], (H, 3 * H), bH)
        self.bih_f = _uniform(ks[4], (1, 3 * H), bH)
        self.bhh_f = _uniform(ks[5], (1, 3 * H), bH)
        self.wih_b = _uniform(ks[6], (E, 3 * H), bH)
        self.whh_b = _uniform(ks[7], (H, 3 * H), bH)
        self.bih_b = _uniform(ks[8], (1, 3 * H), bH)
        self.bhh_b = _uniform(ks[9], (1, 3 * H), bH)

        # transform_mode=MLP: Linear(joint_size -> transformed_size, no bias) + ReLU
        bD = 1.0 / float(np.sqrt(D))
        self.w_head = _uniform(ks[10], (D, S), bD)
        self.w_tail = _uniform(ks[11], (D, S), bD)

        # score_mode=BI_AFFINE: middle_matrix (S+1, S), uniform(+-1/sqrt(S))
        bS = 1.0 / float(np.sqrt(S))
        mm = _uniform(ks[12], (S + 1, S), bS)
        self.m_top = mm[:S]             # (S, S)
        self.m_bias = mm[S:S + 1]       # (1, S) -- bias row for the ones column

        # ---- derived layouts for the fused kernel ----
        hi = jax.lax.Precision.HIGHEST
        # embedding tables pre-composed with the GRU input projection
        # (b_ih folded into the word tables; exactly one word row is selected
        #  per position so the bias is applied exactly once).
        self.gate_wf = jnp.dot(self.word_emb, self.wih_f[:We], precision=hi) + self.bih_f
        self.gate_pf = jnp.dot(self.pos_emb, self.wih_f[We:], precision=hi)
        self.gate_wb = jnp.dot(self.word_emb, self.wih_b[:We], precision=hi) + self.bih_b
        self.gate_pb = jnp.dot(self.pos_emb, self.wih_b[We:], precision=hi)
        self.w_head_tail = jnp.concatenate([self.w_head, self.w_tail], axis=1)  # (2H, 2S)

        self._jit_forward = jax.jit(self._forward_impl)

    # ---------------- Pallas forward (jitted wrapper) ----------------
    def _forward_impl(self, word_indices, pos_tag_indices):
        B, T = word_indices.shape
        Bp = ((B + 7) // 8) * 8          # pad batch to the 8-sublane tile

        # pad + time-major flatten of the int32 indices (fused under jit)
        widx = jnp.zeros((Bp, T), jnp.int32).at[:B].set(word_indices.astype(jnp.int32))
        pidx = jnp.zeros((Bp, T), jnp.int32).at[:B].set(pos_tag_indices.astype(jnp.int32))
        widx = widx.T.reshape(T * Bp, 1)
        pidx = pidx.T.reshape(T * Bp, 1)

        vmem = pl.BlockSpec(memory_space=pltpu.MemorySpace.VMEM)
        out = pl.pallas_call(
            _parser_fused_kernel,
            out_shape=jax.ShapeDtypeStruct((B, T, 128), jnp.float32),
            in_specs=[vmem] * 13,
            out_specs=vmem,
            scratch_shapes=[pltpu.VMEM((T * Bp, self.S), jnp.float32),
                            pltpu.VMEM((T * Bp, self.S), jnp.float32)],
        )(widx, pidx,
          self.gate_wf, self.gate_pf, self.gate_wb, self.gate_pb,
          self.whh_f, self.bhh_f, self.whh_b, self.bhh_b,
          self.w_head_tail, self.m_top, self.m_bias)
        # lane-dense slab -> (B, T, T); slice is fused inside the jit.
        return out[:, :, :T]

    def forward(self, word_indices, pos_tag_indices, caps=None, seq_lens=None):
        # word_dp / tag_dp dropouts are identity in eval mode; all seq_lens
        # are assumed == max_len (documented above).
        return self._jit_forward(word_indices, pos_tag_indices)

    # ---------------- pure-JAX reference (for verification only) ----------------
    def reference_forward(self, word_indices, pos_tag_indices):
        B, T = word_indices.shape
        H = self.H
        joint = jnp.concatenate([self.word_emb[word_indices],
                                 self.pos_emb[pos_tag_indices]], axis=-1)
        x = jnp.transpose(joint, (1, 0, 2))

        def gru_ref(x_tbe, wih, whh, bih, bhh):
            def step(h, xt):
                gi = xt @ wih + bih[0]
                gh = h @ whh + bhh[0]
                r = jax.nn.sigmoid(gi[:, :H] + gh[:, :H])
                z = jax.nn.sigmoid(gi[:, H:2 * H] + gh[:, H:2 * H])
                n = jnp.tanh(gi[:, 2 * H:] + r * gh[:, 2 * H:])
                hn = (1.0 - z) * n + z * h
                return hn, hn
            _, ys = lax.scan(step, jnp.zeros((B, H), jnp.float32), x_tbe)
            return ys

        fwd = gru_ref(x, self.wih_f, self.whh_f, self.bih_f, self.bhh_f)
        bwd = gru_ref(x[::-1], self.wih_b, self.whh_b, self.bih_b, self.bhh_b)[::-1]
        reps = jnp.transpose(jnp.concatenate([fwd, bwd], axis=-1), (1, 0, 2))

        out = []
        for b in range(B):
            head = jnp.maximum(reps[b] @ self.w_head, 0.0)
            tail = jnp.maximum(reps[b] @ self.w_tail, 0.0)
            biased_head = jnp.concatenate([head, jnp.ones((T, 1), jnp.float32)], axis=1)
            mm = jnp.concatenate([self.m_top, self.m_bias], axis=0)
            out.append(biased_head @ mm @ tail.T)
        return out


if __name__ == "__main__":
    B, T = 2, 8
    parser = PallasParser(jax.random.PRNGKey(0))

    k1, k2 = jax.random.split(jax.random.PRNGKey(0), 2)
    word_indices = jax.random.randint(k1, (B, T), 0, parser.word_vocab_size)
    pos_tag_indices = jax.random.randint(k2, (B, T), 0, parser.pos_vocab_size)
    seq_lens = [T] * B

    scores = parser.forward(word_indices, pos_tag_indices, caps=None, seq_lens=seq_lens)
    scores = jax.block_until_ready(scores)
    assert scores.shape == (B, T, T)

    ref = parser.reference_forward(word_indices, pos_tag_indices)
    for b in range(B):
        np.testing.assert_allclose(np.asarray(scores[b]), np.asarray(ref[b]),
                                   rtol=2e-2, atol=2e-2)

    print("KERNEL_OK")
</pallas_src>

<mosaic_0001>
module attributes {stable_mosaic.version = 11 : i64} {
  func.func @_parser_fused_kernel(%arg0: memref<64x1xi32, #tpu.memory_space<vmem>>, %arg1: memref<64x1xi32, #tpu.memory_space<vmem>>, %arg2: memref<50x96xf32, #tpu.memory_space<vmem>>, %arg3: memref<10x96xf32, #tpu.memory_space<vmem>>, %arg4: memref<50x96xf32, #tpu.memory_space<vmem>>, %arg5: memref<10x96xf32, #tpu.memory_space<vmem>>, %arg6: memref<32x96xf32, #tpu.memory_space<vmem>>, %arg7: memref<1x96xf32, #tpu.memory_space<vmem>>, %arg8: memref<32x96xf32, #tpu.memory_space<vmem>>, %arg9: memref<1x96xf32, #tpu.memory_space<vmem>>, %arg10: memref<64x64xf32, #tpu.memory_space<vmem>>, %arg11: memref<32x32xf32, #tpu.memory_space<vmem>>, %arg12: memref<1x32xf32, #tpu.memory_space<vmem>>, %arg13: memref<2x8x128xf32, #tpu.memory_space<vmem>>, %arg14: memref<64x32xf32, #tpu.memory_space<vmem>>, %arg15: memref<64x32xf32, #tpu.memory_space<vmem>>) attributes {dimension_semantics = [], scalar_prefetch = 0 : i64, scratch_operands = 2 : i64, tpu.core_type = #tpu.core_type<tc>} {
    %0 = tpu.iota {dimensions = array<i32: 1>} : vector<64x50xi32>
    %c0 = arith.constant 0 : index
    %c0_0 = arith.constant 0 : index
    %1 = vector.load %arg0[%c0, %c0_0] : memref<64x1xi32, #tpu.memory_space<vmem>>, vector<64x1xi32>
    %2 = vector.broadcast %1 : vector<64x1xi32> to vector<64x50xi32>
    %3 = arith.cmpi eq, %0, %2 : vector<64x50xi32>
    %4 = arith.extui %3 : vector<64x50xi1> to vector<64x50xi32>
    %5 = arith.sitofp %4 : vector<64x50xi32> to vector<64x50xf32>
    %6 = tpu.iota {dimensions = array<i32: 1>} : vector<64x10xi32>
    %c0_1 = arith.constant 0 : index
    %c0_2 = arith.constant 0 : index
    %7 = vector.load %arg1[%c0_1, %c0_2] : memref<64x1xi32, #tpu.memory_space<vmem>>, vector<64x1xi32>
    %8 = vector.broadcast %7 : vector<64x1xi32> to vector<64x10xi32>
    %9 = arith.cmpi eq, %6, %8 : vector<64x10xi32>
    %10 = arith.extui %9 : vector<64x10xi1> to vector<64x10xi32>
    %11 = arith.sitofp %10 : vector<64x10xi32> to vector<64x10xf32>
    %c0_3 = arith.constant 0 : index
    %c0_4 = arith.constant 0 : index
    %12 = vector.load %arg2[%c0_3, %c0_4] : memref<50x96xf32, #tpu.memory_space<vmem>>, vector<50x96xf32>
    %cst = arith.constant dense<0.000000e+00> : vector<64x96xf32>
    %13 = tpu.matmul %5, %12, %cst {dimension_numbers = #tpu.dot_dimension_numbers<[1], [0], [0], [1], [0, 0, 1, 1], [], []>} : vector<64x50xf32>, vector<50x96xf32>, vector<64x96xf32> -> vector<64x96xf32>
    %c0_5 = arith.constant 0 : index
    %c0_6 = arith.constant 0 : index
    %14 = vector.load %arg3[%c0_5, %c0_6] : memref<10x96xf32, #tpu.memory_space<vmem>>, vector<10x96xf32>
    %cst_7 = arith.constant dense<0.000000e+00> : vector<64x96xf32>
    %15 = tpu.matmul %11, %14, %cst_7 {dimension_numbers = #tpu.dot_dimension_numbers<[1], [0], [0], [1], [0, 0, 1, 1], [], []>} : vector<64x10xf32>, vector<10x96xf32>, vector<64x96xf32> -> vector<64x96xf32>
    %16 = arith.addf %13, %15 : vector<64x96xf32>
    %c0_8 = arith.constant 0 : index
    %c0_9 = arith.constant 0 : index
    %17 = vector.load %arg4[%c0_8, %c0_9] : memref<50x96xf32, #tpu.memory_space<vmem>>, vector<50x96xf32>
    %cst_10 = arith.constant dense<0.000000e+00> : vector<64x96xf32>
    %18 = tpu.matmul %5, %17, %cst_10 {dimension_numbers = #tpu.dot_dimension_numbers<[1], [0], [0], [1], [0, 0, 1, 1], [], []>} : vector<64x50xf32>, vector<50x96xf32>, vector<64x96xf32> -> vector<64x96xf32>
    %c0_11 = arith.constant 0 : index
    %c0_12 = arith.constant 0 : index
    %19 = vector.load %arg5[%c0_11, %c0_12] : memref<10x96xf32, #tpu.memory_space<vmem>>, vector<10x96xf32>
    %cst_13 = arith.constant dense<0.000000e+00> : vector<64x96xf32>
    %20 = tpu.matmul %11, %19, %cst_13 {dimension_numbers = #tpu.dot_dimension_numbers<[1], [0], [0], [1], [0, 0, 1, 1], [], []>} : vector<64x10xf32>, vector<10x96xf32>, vector<64x96xf32> -> vector<64x96xf32>
    %21 = arith.addf %18, %20 : vector<64x96xf32>
    %c0_14 = arith.constant 0 : index
    %c0_15 = arith.constant 0 : index
    %22 = vector.load %arg6[%c0_14, %c0_15] : memref<32x96xf32, #tpu.memory_space<vmem>>, vector<32x96xf32>
    %c0_16 = arith.constant 0 : index
    %c0_17 = arith.constant 0 : index
    %23 = vector.load %arg7[%c0_16, %c0_17] : memref<1x96xf32, #tpu.memory_space<vmem>>, vector<1x96xf32>
    %c0_18 = arith.constant 0 : index
    %c0_19 = arith.constant 0 : index
    %24 = vector.load %arg8[%c0_18, %c0_19] : memref<32x96xf32, #tpu.memory_space<vmem>>, vector<32x96xf32>
    %c0_20 = arith.constant 0 : index
    %c0_21 = arith.constant 0 : index
    %25 = vector.load %arg9[%c0_20, %c0_21] : memref<1x96xf32, #tpu.memory_space<vmem>>, vector<1x96xf32>
    %cst_22 = arith.constant 0.000000e+00 : f32
    %26 = vector.broadcast %cst_22 : f32 to vector<8x32xf32>
    %cst_23 = arith.constant 0.000000e+00 : f32
    %27 = vector.broadcast %cst_23 : f32 to vector<8x32xf32>
    %cst_24 = arith.constant dense<0.000000e+00> : vector<8x96xf32>
    %28 = tpu.matmul %26, %22, %cst_24 {dimension_numbers = #tpu.dot_dimension_numbers<[1], [0], [0], [1], [0, 0, 1, 1], [], []>} : vector<8x32xf32>, vector<32x96xf32>, vector<8x96xf32> -> vector<8x96xf32>
    %29 = vector.broadcast %23 : vector<1x96xf32> to vector<8x96xf32>
    %30 = arith.addf %28, %29 : vector<8x96xf32>
    %cst_25 = arith.constant dense<0.000000e+00> : vector<8x96xf32>
    %31 = tpu.matmul %27, %24, %cst_25 {dimension_numbers = #tpu.dot_dimension_numbers<[1], [0], [0], [1], [0, 0, 1, 1], [], []>} : vector<8x32xf32>, vector<32x96xf32>, vector<8x96xf32> -> vector<8x96xf32>
    %32 = vector.broadcast %25 : vector<1x96xf32> to vector<8x96xf32>
    %33 = arith.addf %31, %32 : vector<8x96xf32>
    %34 = vector.extract_strided_slice %16 {offsets = [0, 0], sizes = [8, 96], strides = [1, 1]} : vector<64x96xf32> to vector<8x96xf32>
    %35 = vector.extract_strided_slice %34 {offsets = [0, 0], sizes = [8, 32], strides = [1, 1]} : vector<8x96xf32> to vector<8x32xf32>
    %36 = vector.extract_strided_slice %30 {offsets = [0, 0], sizes = [8, 32], strides = [1, 1]} : vector<8x96xf32> to vector<8x32xf32>
    %37 = arith.addf %35, %36 : vector<8x32xf32>
    %38 = arith.negf %37 : vector<8x32xf32>
    %39 = math.exp %38 : vector<8x32xf32>
    %cst_26 = arith.constant 1.000000e+00 : f32
    %40 = vector.broadcast %cst_26 : f32 to vector<8x32xf32>
    %41 = arith.addf %40, %39 : vector<8x32xf32>
    %42 = arith.divf %40, %41 : vector<8x32xf32>
    %43 = vector.extract_strided_slice %34 {offsets = [0, 32], sizes = [8, 32], strides = [1, 1]} : vector<8x96xf32> to vector<8x32xf32>
    %44 = vector.extract_strided_slice %30 {offsets = [0, 32], sizes = [8, 32], strides = [1, 1]} : vector<8x96xf32> to vector<8x32xf32>
    %45 = arith.addf %43, %44 : vector<8x32xf32>
    %46 = arith.negf %45 : vector<8x32xf32>
    %47 = math.exp %46 : vector<8x32xf32>
    %cst_27 = arith.constant 1.000000e+00 : f32
    %48 = vector.broadcast %cst_27 : f32 to vector<8x32xf32>
    %49 = arith.addf %48, %47 : vector<8x32xf32>
    %50 = arith.divf %48, %49 : vector<8x32xf32>
    %51 = vector.extract_strided_slice %34 {offsets = [0, 64], sizes = [8, 32], strides = [1, 1]} : vector<8x96xf32> to vector<8x32xf32>
    %52 = vector.extract_strided_slice %30 {offsets = [0, 64], sizes = [8, 32], strides = [1, 1]} : vector<8x96xf32> to vector<8x32xf32>
    %53 = arith.mulf %42, %52 : vector<8x32xf32>
    %54 = arith.addf %51, %53 : vector<8x32xf32>
    %55 = math.tanh %54 : vector<8x32xf32>
    %cst_28 = arith.constant 1.000000e+00 : f32
    %56 = vector.broadcast %cst_28 : f32 to vector<8x32xf32>
    %57 = arith.subf %56, %50 : vector<8x32xf32>
    %58 = arith.mulf %57, %55 : vector<8x32xf32>
    %59 = arith.mulf %50, %26 : vector<8x32xf32>
    %60 = arith.addf %58, %59 : vector<8x32xf32>
    %61 = vector.extract_strided_slice %21 {offsets = [56, 0], sizes = [8, 96], strides = [1, 1]} : vector<64x96xf32> to vector<8x96xf32>
    %62 = vector.extract_strided_slice %61 {offsets = [0, 0], sizes = [8, 32], strides = [1, 1]} : vector<8x96xf32> to vector<8x32xf32>
    %63 = vector.extract_strided_slice %33 {offsets = [0, 0], sizes = [8, 32], strides = [1, 1]} : vector<8x96xf32> to vector<8x32xf32>
    %64 = arith.addf %62, %63 : vector<8x32xf32>
    %65 = arith.negf %64 : vector<8x32xf32>
    %66 = math.exp %65 : vector<8x32xf32>
    %cst_29 = arith.constant 1.000000e+00 : f32
    %67 = vector.broadcast %cst_29 : f32 to vector<8x32xf32>
    %68 = arith.addf %67, %66 : vector<8x32xf32>
    %69 = arith.divf %67, %68 : vector<8x32xf32>
    %70 = vector.extract_strided_slice %61 {offsets = [0, 32], sizes = [8, 32], strides = [1, 1]} : vector<8x96xf32> to vector<8x32xf32>
    %71 = vector.extract_strided_slice %33 {offsets = [0, 32], sizes = [8, 32], strides = [1, 1]} : vector<8x96xf32> to vector<8x32xf32>
    %72 = arith.addf %70, %71 : vector<8x32xf32>
    %73 = arith.negf %72 : vector<8x32xf32>
    %74 = math.exp %73 : vector<8x32xf32>
    %cst_30 = arith.constant 1.000000e+00 : f32
    %75 = vector.broadcast %cst_30 : f32 to vector<8x32xf32>
    %76 = arith.addf %75, %74 : vector<8x32xf32>
    %77 = arith.divf %75, %76 : vector<8x32xf32>
    %78 = vector.extract_strided_slice %61 {offsets = [0, 64], sizes = [8, 32], strides = [1, 1]} : vector<8x96xf32> to vector<8x32xf32>
    %79 = vector.extract_strided_slice %33 {offsets = [0, 64], sizes = [8, 32], strides = [1, 1]} : vector<8x96xf32> to vector<8x32xf32>
    %80 = arith.mulf %69, %79 : vector<8x32xf32>
    %81 = arith.addf %78, %80 : vector<8x32xf32>
    %82 = math.tanh %81 : vector<8x32xf32>
    %cst_31 = arith.constant 1.000000e+00 : f32
    %83 = vector.broadcast %cst_31 : f32 to vector<8x32xf32>
    %84 = arith.subf %83, %77 : vector<8x32xf32>
    %85 = arith.mulf %84, %82 : vector<8x32xf32>
    %86 = arith.mulf %77, %27 : vector<8x32xf32>
    %87 = arith.addf %85, %86 : vector<8x32xf32>
    %cst_32 = arith.constant dense<0.000000e+00> : vector<8x96xf32>
    %88 = tpu.matmul %60, %22, %cst_32 {dimension_numbers = #tpu.dot_dimension_numbers<[1], [0], [0], [1], [0, 0, 1, 1], [], []>} : vector<8x32xf32>, vector<32x96xf32>, vector<8x96xf32> -> vector<8x96xf32>
    %89 = vector.broadcast %23 : vector<1x96xf32> to vector<8x96xf32>
    %90 = arith.addf %88, %89 : vector<8x96xf32>
    %cst_33 = arith.constant dense<0.000000e+00> : vector<8x96xf32>
    %91 = tpu.matmul %87, %24, %cst_33 {dimension_numbers = #tpu.dot_dimension_numbers<[1], [0], [0], [1], [0, 0, 1, 1], [], []>} : vector<8x32xf32>, vector<32x96xf32>, vector<8x96xf32> -> vector<8x96xf32>
    %92 = vector.broadcast %25 : vector<1x96xf32> to vector<8x96xf32>
    %93 = arith.addf %91, %92 : vector<8x96xf32>
    %94 = vector.extract_strided_slice %16 {offsets = [8, 0], sizes = [8, 96], strides = [1, 1]} : vector<64x96xf32> to vector<8x96xf32>
    %95 = vector.extract_strided_slice %94 {offsets = [0, 0], sizes = [8, 32], strides = [1, 1]} : vector<8x96xf32> to vector<8x32xf32>
    %96 = vector.extract_strided_slice %90 {offsets = [0, 0], sizes = [8, 32], strides = [1, 1]} : vector<8x96xf32> to vector<8x32xf32>
    %97 = arith.addf %95, %96 : vector<8x32xf32>
    %98 = arith.negf %97 : vector<8x32xf32>
    %99 = math.exp %98 : vector<8x32xf32>
    %cst_34 = arith.constant 1.000000e+00 : f32
    %100 = vector.broadcast %cst_34 : f32 to vector<8x32xf32>
    %101 = arith.addf %100, %99 : vector<8x32xf32>
    %102 = arith.divf %100, %101 : vector<8x32xf32>
    %103 = vector.extract_strided_slice %94 {offsets = [0, 32], sizes = [8, 32], strides = [1, 1]} : vector<8x96xf32> to vector<8x32xf32>
    %104 = vector.extract_strided_slice %90 {offsets = [0, 32], sizes = [8, 32], strides = [1, 1]} : vector<8x96xf32> to vector<8x32xf32>
    %105 = arith.addf %103, %104 : vector<8x32xf32>
    %106 = arith.negf %105 : vector<8x32xf32>
    %107 = math.exp %106 : vector<8x32xf32>
    %cst_35 = arith.constant 1.000000e+00 : f32
    %108 = vector.broadcast %cst_35 : f32 to vector<8x32xf32>
    %109 = arith.addf %108, %107 : vector<8x32xf32>
    %110 = arith.divf %108, %109 : vector<8x32xf32>
    %111 = vector.extract_strided_slice %94 {offsets = [0, 64], sizes = [8, 32], strides = [1, 1]} : vector<8x96xf32> to vector<8x32xf32>
    %112 = vector.extract_strided_slice %90 {offsets = [0, 64], sizes = [8, 32], strides = [1, 1]} : vector<8x96xf32> to vector<8x32xf32>
    %113 = arith.mulf %102, %112 : vector<8x32xf32>
    %114 = arith.addf %111, %113 : vector<8x32xf32>
    %115 = math.tanh %114 : vector<8x32xf32>
    %cst_36 = arith.constant 1.000000e+00 : f32
    %116 = vector.broadcast %cst_36 : f32 to vector<8x32xf32>
    %117 = arith.subf %116, %110 : vector<8x32xf32>
    %118 = arith.mulf %117, %115 : vector<8x32xf32>
    %119 = arith.mulf %110, %60 : vector<8x32xf32>
    %120 = arith.addf %118, %119 : vector<8x32xf32>
    %121 = vector.extract_strided_slice %21 {offsets = [48, 0], sizes = [8, 96], strides = [1, 1]} : vector<64x96xf32> to vector<8x96xf32>
    %122 = vector.extract_strided_slice %121 {offsets = [0, 0], sizes = [8, 32], strides = [1, 1]} : vector<8x96xf32> to vector<8x32xf32>
    %123 = vector.extract_strided_slice %93 {offsets = [0, 0], sizes = [8, 32], strides = [1, 1]} : vector<8x96xf32> to vector<8x32xf32>
    %124 = arith.addf %122, %123 : vector<8x32xf32>
    %125 = arith.negf %124 : vector<8x32xf32>
    %126 = math.exp %125 : vector<8x32xf32>
    %cst_37 = arith.constant 1.000000e+00 : f32
    %127 = vector.broadcast %cst_37 : f32 to vector<8x32xf32>
    %128 = arith.addf %127, %126 : vector<8x32xf32>
    %129 = arith.divf %127, %128 : vector<8x32xf32>
    %130 = vector.extract_strided_slice %121 {offsets = [0, 32], sizes = [8, 32], strides = [1, 1]} : vector<8x96xf32> to vector<8x32xf32>
    %131 = vector.extract_strided_slice %93 {offsets = [0, 32], sizes = [8, 32], strides = [1, 1]} : vector<8x96xf32> to vector<8x32xf32>
    %132 = arith.addf %130, %131 : vector<8x32xf32>
    %133 = arith.negf %132 : vector<8x32xf32>
    %134 = math.exp %133 : vector<8x32xf32>
    %cst_38 = arith.constant 1.000000e+00 : f32
    %135 = vector.broadcast %cst_38 : f32 to vector<8x32xf32>
    %136 = arith.addf %135, %134 : vector<8x32xf32>
    %137 = arith.divf %135, %136 : vector<8x32xf32>
    %138 = vector.extract_strided_slice %121 {offsets = [0, 64], sizes = [8, 32], strides = [1, 1]} : vector<8x96xf32> to vector<8x32xf32>
    %139 = vector.extract_strided_slice %93 {offsets = [0, 64], sizes = [8, 32], strides = [1, 1]} : vector<8x96xf32> to vector<8x32xf32>
    %140 = arith.mulf %129, %139 : vector<8x32xf32>
    %141 = arith.addf %138, %140 : vector<8x32xf32>
    %142 = math.tanh %141 : vector<8x32xf32>
    %cst_39 = arith.constant 1.000000e+00 : f32
    %143 = vector.broadcast %cst_39 : f32 to vector<8x32xf32>
    %144 = arith.subf %143, %137 : vector<8x32xf32>
    %145 = arith.mulf %144, %142 : vector<8x32xf32>
    %146 = arith.mulf %137, %87 : vector<8x32xf32>
    %147 = arith.addf %145, %146 : vector<8x32xf32>
    %cst_40 = arith.constant dense<0.000000e+00> : vector<8x96xf32>
    %148 = tpu.matmul %120, %22, %cst_40 {dimension_numbers = #tpu.dot_dimension_numbers<[1], [0], [0], [1], [0, 0, 1, 1], [], []>} : vector<8x32xf32>, vector<32x96xf32>, vector<8x96xf32> -> vector<8x96xf32>
    %149 = vector.broadcast %23 : vector<1x96xf32> to vector<8x96xf32>
    %150 = arith.addf %148, %149 : vector<8x96xf32>
    %cst_41 = arith.constant dense<0.000000e+00> : vector<8x96xf32>
    %151 = tpu.matmul %147, %24, %cst_41 {dimension_numbers = #tpu.dot_dimension_numbers<[1], [0], [0], [1], [0, 0, 1, 1], [], []>} : vector<8x32xf32>, vector<32x96xf32>, vector<8x96xf32> -> vector<8x96xf32>
    %152 = vector.broadcast %25 : vector<1x96xf32> to vector<8x96xf32>
    %153 = arith.addf %151, %152 : vector<8x96xf32>
    %154 = vector.extract_strided_slice %16 {offsets = [16, 0], sizes = [8, 96], strides = [1, 1]} : vector<64x96xf32> to vector<8x96xf32>
    %155 = vector.extract_strided_slice %154 {offsets = [0, 0], sizes = [8, 32], strides = [1, 1]} : vector<8x96xf32> to vector<8x32xf32>
    %156 = vector.extract_strided_slice %150 {offsets = [0, 0], sizes = [8, 32], strides = [1, 1]} : vector<8x96xf32> to vector<8x32xf32>
    %157 = arith.addf %155, %156 : vector<8x32xf32>
    %158 = arith.negf %157 : vector<8x32xf32>
    %159 = math.exp %158 : vector<8x32xf32>
    %cst_42 = arith.constant 1.000000e+00 : f32
    %160 = vector.broadcast %cst_42 : f32 to vector<8x32xf32>
    %161 = arith.addf %160, %159 : vector<8x32xf32>
    %162 = arith.divf %160, %161 : vector<8x32xf32>
    %163 = vector.extract_strided_slice %154 {offsets = [0, 32], sizes = [8, 32], strides = [1, 1]} : vector<8x96xf32> to vector<8x32xf32>
    %164 = vector.extract_strided_slice %150 {offsets = [0, 32], sizes = [8, 32], strides = [1, 1]} : vector<8x96xf32> to vector<8x32xf32>
    %165 = arith.addf %163, %164 : vector<8x32xf32>
    %166 = arith.negf %165 : vector<8x32xf32>
    %167 = math.exp %166 : vector<8x32xf32>
    %cst_43 = arith.constant 1.000000e+00 : f32
    %168 = vector.broadcast %cst_43 : f32 to vector<8x32xf32>
    %169 = arith.addf %168, %167 : vector<8x32xf32>
    %170 = arith.divf %168, %169 : vector<8x32xf32>
    %171 = vector.extract_strided_slice %154 {offsets = [0, 64], sizes = [8, 32], strides = [1, 1]} : vector<8x96xf32> to vector<8x32xf32>
    %172 = vector.extract_strided_slice %150 {offsets = [0, 64], sizes = [8, 32], strides = [1, 1]} : vector<8x96xf32> to vector<8x32xf32>
    %173 = arith.mulf %162, %172 : vector<8x32xf32>
    %174 = arith.addf %171, %173 : vector<8x32xf32>
    %175 = math.tanh %174 : vector<8x32xf32>
    %cst_44 = arith.constant 1.000000e+00 : f32
    %176 = vector.broadcast %cst_44 : f32 to vector<8x32xf32>
    %177 = arith.subf %176, %170 : vector<8x32xf32>
    %178 = arith.mulf %177, %175 : vector<8x32xf32>
    %179 = arith.mulf %170, %120 : vector<8x32xf32>
    %180 = arith.addf %178, %179 : vector<8x32xf32>
    %181 = vector.extract_strided_slice %21 {offsets = [40, 0], sizes = [8, 96], strides = [1, 1]} : vector<64x96xf32> to vector<8x96xf32>
    %182 = vector.extract_strided_slice %181 {offsets = [0, 0], sizes = [8, 32], strides = [1, 1]} : vector<8x96xf32> to vector<8x32xf32>
    %183 = vector.extract_strided_slice %153 {offsets = [0, 0], sizes = [8, 32], strides = [1, 1]} : vector<8x96xf32> to vector<8x32xf32>
    %184 = arith.addf %182, %183 : vector<8x32xf32>
    %185 = arith.negf %184 : vector<8x32xf32>
    %186 = math.exp %185 : vector<8x32xf32>
    %cst_45 = arith.constant 1.000000e+00 : f32
    %187 = vector.broadcast %cst_45 : f32 to vector<8x32xf32>
    %188 = arith.addf %187, %186 : vector<8x32xf32>
    %189 = arith.divf %187, %188 : vector<8x32xf32>
    %190 = vector.extract_strided_slice %181 {offsets = [0, 32], sizes = [8, 32], strides = [1, 1]} : vector<8x96xf32> to vector<8x32xf32>
    %191 = vector.extract_strided_slice %153 {offsets = [0, 32], sizes = [8, 32], strides = [1, 1]} : vector<8x96xf32> to vector<8x32xf32>
    %192 = arith.addf %190, %191 : vector<8x32xf32>
    %193 = arith.negf %192 : vector<8x32xf32>
    %194 = math.exp %193 : vector<8x32xf32>
    %cst_46 = arith.constant 1.000000e+00 : f32
    %195 = vector.broadcast %cst_46 : f32 to vector<8x32xf32>
    %196 = arith.addf %195, %194 : vector<8x32xf32>
    %197 = arith.divf %195, %196 : vector<8x32xf32>
    %198 = vector.extract_strided_slice %181 {offsets = [0, 64], sizes = [8, 32], strides = [1, 1]} : vector<8x96xf32> to vector<8x32xf32>
    %199 = vector.extract_strided_slice %153 {offsets = [0, 64], sizes = [8, 32], strides = [1, 1]} : vector<8x96xf32> to vector<8x32xf32>
    %200 = arith.mulf %189, %199 : vector<8x32xf32>
    %201 = arith.addf %198, %200 : vector<8x32xf32>
    %202 = math.tanh %201 : vector<8x32xf32>
    %cst_47 = arith.constant 1.000000e+00 : f32
    %203 = vector.broadcast %cst_47 : f32 to vector<8x32xf32>
    %204 = arith.subf %203, %197 : vector<8x32xf32>
    %205 = arith.mulf %204, %202 : vector<8x32xf32>
    %206 = arith.mulf %197, %147 : vector<8x32xf32>
    %207 = arith.addf %205, %206 : vector<8x32xf32>
    %cst_48 = arith.constant dense<0.000000e+00> : vector<8x96xf32>
    %208 = tpu.matmul %180, %22, %cst_48 {dimension_numbers = #tpu.dot_dimension_numbers<[1], [0], [0], [1], [0, 0, 1, 1], [], []>} : vector<8x32xf32>, vector<32x96xf32>, vector<8x96xf32> -> vector<8x96xf32>
    %209 = vector.broadcast %23 : vector<1x96xf32> to vector<8x96xf32>
    %210 = arith.addf %208, %209 : vector<8x96xf32>
    %cst_49 = arith.constant dense<0.000000e+00> : vector<8x96xf32>
    %211 = tpu.matmul %207, %24, %cst_49 {dimension_numbers = #tpu.dot_dimension_numbers<[1], [0], [0], [1], [0, 0, 1, 1], [], []>} : vector<8x32xf32>, vector<32x96xf32>, vector<8x96xf32> -> vector<8x96xf32>
    %212 = vector.broadcast %25 : vector<1x96xf32> to vector<8x96xf32>
    %213 = arith.addf %211, %212 : vector<8x96xf32>
    %214 = vector.extract_strided_slice %16 {offsets = [24, 0], sizes = [8, 96], strides = [1, 1]} : vector<64x96xf32> to vector<8x96xf32>
    %215 = vector.extract_strided_slice %214 {offsets = [0, 0], sizes = [8, 32], strides = [1, 1]} : vector<8x96xf32> to vector<8x32xf32>
    %216 = vector.extract_strided_slice %210 {offsets = [0, 0], sizes = [8, 32], strides = [1, 1]} : vector<8x96xf32> to vector<8x32xf32>
    %217 = arith.addf %215, %216 : vector<8x32xf32>
    %218 = arith.negf %217 : vector<8x32xf32>
    %219 = math.exp %218 : vector<8x32xf32>
    %cst_50 = arith.constant 1.000000e+00 : f32
    %220 = vector.broadcast %cst_50 : f32 to vector<8x32xf32>
    %221 = arith.addf %220, %219 : vector<8x32xf32>
    %222 = arith.divf %220, %221 : vector<8x32xf32>
    %223 = vector.extract_strided_slice %214 {offsets = [0, 32], sizes = [8, 32], strides = [1, 1]} : vector<8x96xf32> to vector<8x32xf32>
    %224 = vector.extract_strided_slice %210 {offsets = [0, 32], sizes = [8, 32], strides = [1, 1]} : vector<8x96xf32> to vector<8x32xf32>
    %225 = arith.addf %223, %224 : vector<8x32xf32>
    %226 = arith.negf %225 : vector<8x32xf32>
    %227 = math.exp %226 : vector<8x32xf32>
    %cst_51 = arith.constant 1.000000e+00 : f32
    %228 = vector.broadcast %cst_51 : f32 to vector<8x32xf32>
    %229 = arith.addf %228, %227 : vector<8x32xf32>
    %230 = arith.divf %228, %229 : vector<8x32xf32>
    %231 = vector.extract_strided_slice %214 {offsets = [0, 64], sizes = [8, 32], strides = [1, 1]} : vector<8x96xf32> to vector<8x32xf32>
    %232 = vector.extract_strided_slice %210 {offsets = [0, 64], sizes = [8, 32], strides = [1, 1]} : vector<8x96xf32> to vector<8x32xf32>
    %233 = arith.mulf %222, %232 : vector<8x32xf32>
    %234 = arith.addf %231, %233 : vector<8x32xf32>
    %235 = math.tanh %234 : vector<8x32xf32>
    %cst_52 = arith.constant 1.000000e+00 : f32
    %236 = vector.broadcast %cst_52 : f32 to vector<8x32xf32>
    %237 = arith.subf %236, %230 : vector<8x32xf32>
    %238 = arith.mulf %237, %235 : vector<8x32xf32>
    %239 = arith.mulf %230, %180 : vector<8x32xf32>
    %240 = arith.addf %238, %239 : vector<8x32xf32>
    %241 = vector.extract_strided_slice %21 {offsets = [32, 0], sizes = [8, 96], strides = [1, 1]} : vector<64x96xf32> to vector<8x96xf32>
    %242 = vector.extract_strided_slice %241 {offsets = [0, 0], sizes = [8, 32], strides = [1, 1]} : vector<8x96xf32> to vector<8x32xf32>
    %243 = vector.extract_strided_slice %213 {offsets = [0, 0], sizes = [8, 32], strides = [1, 1]} : vector<8x96xf32> to vector<8x32xf32>
    %244 = arith.addf %242, %243 : vector<8x32xf32>
    %245 = arith.negf %244 : vector<8x32xf32>
    %246 = math.exp %245 : vector<8x32xf32>
    %cst_53 = arith.constant 1.000000e+00 : f32
    %247 = vector.broadcast %cst_53 : f32 to vector<8x32xf32>
    %248 = arith.addf %247, %246 : vector<8x32xf32>
    %249 = arith.divf %247, %248 : vector<8x32xf32>
    %250 = vector.extract_strided_slice %241 {offsets = [0, 32], sizes = [8, 32], strides = [1, 1]} : vector<8x96xf32> to vector<8x32xf32>
    %251 = vector.extract_strided_slice %213 {offsets = [0, 32], sizes = [8, 32], strides = [1, 1]} : vector<8x96xf32> to vector<8x32xf32>
    %252 = arith.addf %250, %251 : vector<8x32xf32>
    %253 = arith.negf %252 : vector<8x32xf32>
    %254 = math.exp %253 : vector<8x32xf32>
    %cst_54 = arith.constant 1.000000e+00 : f32
    %255 = vector.broadcast %cst_54 : f32 to vector<8x32xf32>
    %256 = arith.addf %255, %254 : vector<8x32xf32>
    %257 = arith.divf %255, %256 : vector<8x32xf32>
    %258 = vector.extract_strided_slice %241 {offsets = [0, 64], sizes = [8, 32], strides = [1, 1]} : vector<8x96xf32> to vector<8x32xf32>
    %259 = vector.extract_strided_slice %213 {offsets = [0, 64], sizes = [8, 32], strides = [1, 1]} : vector<8x96xf32> to vector<8x32xf32>
    %260 = arith.mulf %249, %259 : vector<8x32xf32>
    %261 = arith.addf %258, %260 : vector<8x32xf32>
    %262 = math.tanh %261 : vector<8x32xf32>
    %cst_55 = arith.constant 1.000000e+00 : f32
    %263 = vector.broadcast %cst_55 : f32 to vector<8x32xf32>
    %264 = arith.subf %263, %257 : vector<8x32xf32>
    %265 = arith.mulf %264, %262 : vector<8x32xf32>
    %266 = arith.mulf %257, %207 : vector<8x32xf32>
    %267 = arith.addf %265, %266 : vector<8x32xf32>
    %cst_56 = arith.constant dense<0.000000e+00> : vector<8x96xf32>
    %268 = tpu.matmul %240, %22, %cst_56 {dimension_numbers = #tpu.dot_dimension_numbers<[1], [0], [0], [1], [0, 0, 1, 1], [], []>} : vector<8x32xf32>, vector<32x96xf32>, vector<8x96xf32> -> vector<8x96xf32>
    %269 = vector.broadcast %23 : vector<1x96xf32> to vector<8x96xf32>
    %270 = arith.addf %268, %269 : vector<8x96xf32>
    %cst_57 = arith.constant dense<0.000000e+00> : vector<8x96xf32>
    %271 = tpu.matmul %267, %24, %cst_57 {dimension_numbers = #tpu.dot_dimension_numbers<[1], [0], [0], [1], [0, 0, 1, 1], [], []>} : vector<8x32xf32>, vector<32x96xf32>, vector<8x96xf32> -> vector<8x96xf32>
    %272 = vector.broadcast %25 : vector<1x96xf32> to vector<8x96xf32>
    %273 = arith.addf %271, %272 : vector<8x96xf32>
    %274 = vector.extract_strided_slice %16 {offsets = [32, 0], sizes = [8, 96], strides = [1, 1]} : vector<64x96xf32> to vector<8x96xf32>
    %275 = vector.extract_strided_slice %274 {offsets = [0, 0], sizes = [8, 32], strides = [1, 1]} : vector<8x96xf32> to vector<8x32xf32>
    %276 = vector.extract_strided_slice %270 {offsets = [0, 0], sizes = [8, 32], strides = [1, 1]} : vector<8x96xf32> to vector<8x32xf32>
    %277 = arith.addf %275, %276 : vector<8x32xf32>
    %278 = arith.negf %277 : vector<8x32xf32>
    %279 = math.exp %278 : vector<8x32xf32>
    %cst_58 = arith.constant 1.000000e+00 : f32
    %280 = vector.broadcast %cst_58 : f32 to vector<8x32xf32>
    %281 = arith.addf %280, %279 : vector<8x32xf32>
    %282 = arith.divf %280, %281 : vector<8x32xf32>
    %283 = vector.extract_strided_slice %274 {offsets = [0, 32], sizes = [8, 32], strides = [1, 1]} : vector<8x96xf32> to vector<8x32xf32>
    %284 = vector.extract_strided_slice %270 {offsets = [0, 32], sizes = [8, 32], strides = [1, 1]} : vector<8x96xf32> to vector<8x32xf32>
    %285 = arith.addf %283, %284 : vector<8x32xf32>
    %286 = arith.negf %285 : vector<8x32xf32>
    %287 = math.exp %286 : vector<8x32xf32>
    %cst_59 = arith.constant 1.000000e+00 : f32
    %288 = vector.broadcast %cst_59 : f32 to vector<8x32xf32>
    %289 = arith.addf %288, %287 : vector<8x32xf32>
    %290 = arith.divf %288, %289 : vector<8x32xf32>
    %291 = vector.extract_strided_slice %274 {offsets = [0, 64], sizes = [8, 32], strides = [1, 1]} : vector<8x96xf32> to vector<8x32xf32>
    %292 = vector.extract_strided_slice %270 {offsets = [0, 64], sizes = [8, 32], strides = [1, 1]} : vector<8x96xf32> to vector<8x32xf32>
    %293 = arith.mulf %282, %292 : vector<8x32xf32>
    %294 = arith.addf %291, %293 : vector<8x32xf32>
    %295 = math.tanh %294 : vector<8x32xf32>
    %cst_60 = arith.constant 1.000000e+00 : f32
    %296 = vector.broadcast %cst_60 : f32 to vector<8x32xf32>
    %297 = arith.subf %296, %290 : vector<8x32xf32>
    %298 = arith.mulf %297, %295 : vector<8x32xf32>
    %299 = arith.mulf %290, %240 : vector<8x32xf32>
    %300 = arith.addf %298, %299 : vector<8x32xf32>
    %301 = vector.extract_strided_slice %21 {offsets = [24, 0], sizes = [8, 96], strides = [1, 1]} : vector<64x96xf32> to vector<8x96xf32>
    %302 = vector.extract_strided_slice %301 {offsets = [0, 0], sizes = [8, 32], strides = [1, 1]} : vector<8x96xf32> to vector<8x32xf32>
    %303 = vector.extract_strided_slice %273 {offsets = [0, 0], sizes = [8, 32], strides = [1, 1]} : vector<8x96xf32> to vector<8x32xf32>
    %304 = arith.addf %302, %303 : vector<8x32xf32>
    %305 = arith.negf %304 : vector<8x32xf32>
    %306 = math.exp %305 : vector<8x32xf32>
    %cst_61 = arith.constant 1.000000e+00 : f32
    %307 = vector.broadcast %cst_61 : f32 to vector<8x32xf32>
    %308 = arith.addf %307, %306 : vector<8x32xf32>
    %309 = arith.divf %307, %308 : vector<8x32xf32>
    %310 = vector.extract_strided_slice %301 {offsets = [0, 32], sizes = [8, 32], strides = [1, 1]} : vector<8x96xf32> to vector<8x32xf32>
    %311 = vector.extract_strided_slice %273 {offsets = [0, 32], sizes = [8, 32], strides = [1, 1]} : vector<8x96xf32> to vector<8x32xf32>
    %312 = arith.addf %310, %311 : vector<8x32xf32>
    %313 = arith.negf %312 : vector<8x32xf32>
    %314 = math.exp %313 : vector<8x32xf32>
    %cst_62 = arith.constant 1.000000e+00 : f32
    %315 = vector.broadcast %cst_62 : f32 to vector<8x32xf32>
    %316 = arith.addf %315, %314 : vector<8x32xf32>
    %317 = arith.divf %315, %316 : vector<8x32xf32>
    %318 = vector.extract_strided_slice %301 {offsets = [0, 64], sizes = [8, 32], strides = [1, 1]} : vector<8x96xf32> to vector<8x32xf32>
    %319 = vector.extract_strided_slice %273 {offsets = [0, 64], sizes = [8, 32], strides = [1, 1]} : vector<8x96xf32> to vector<8x32xf32>
    %320 = arith.mulf %309, %319 : vector<8x32xf32>
    %321 = arith.addf %318, %320 : vector<8x32xf32>
    %322 = math.tanh %321 : vector<8x32xf32>
    %cst_63 = arith.constant 1.000000e+00 : f32
    %323 = vector.broadcast %cst_63 : f32 to vector<8x32xf32>
    %324 = arith.subf %323, %317 : vector<8x32xf32>
    %325 = arith.mulf %324, %322 : vector<8x32xf32>
    %326 = arith.mulf %317, %267 : vector<8x32xf32>
    %327 = arith.addf %325, %326 : vector<8x32xf32>
    %cst_64 = arith.constant dense<0.000000e+00> : vector<8x96xf32>
    %328 = tpu.matmul %300, %22, %cst_64 {dimension_numbers = #tpu.dot_dimension_numbers<[1], [0], [0], [1], [0, 0, 1, 1], [], []>} : vector<8x32xf32>, vector<32x96xf32>, vector<8x96xf32> -> vector<8x96xf32>
    %329 = vector.broadcast %23 : vector<1x96xf32> to vector<8x96xf32>
    %330 = arith.addf %328, %329 : vector<8x96xf32>
    %cst_65 = arith.constant dense<0.000000e+00> : vector<8x96xf32>
    %331 = tpu.matmul %327, %24, %cst_65 {dimension_numbers = #tpu.dot_dimension_numbers<[1], [0], [0], [1], [0, 0, 1, 1], [], []>} : vector<8x32xf32>, vector<32x96xf32>, vector<8x96xf32> -> vector<8x96xf32>
    %332 = vector.broadcast %25 : vector<1x96xf32> to vector<8x96xf32>
    %333 = arith.addf %331, %332 : vector<8x96xf32>
    %334 = vector.extract_strided_slice %16 {offsets = [40, 0], sizes = [8, 96], strides = [1, 1]} : vector<64x96xf32> to vector<8x96xf32>
    %335 = vector.extract_strided_slice %334 {offsets = [0, 0], sizes = [8, 32], strides = [1, 1]} : vector<8x96xf32> to vector<8x32xf32>
    %336 = vector.extract_strided_slice %330 {offsets = [0, 0], sizes = [8, 32], strides = [1, 1]} : vector<8x96xf32> to vector<8x32xf32>
    %337 = arith.addf %335, %336 : vector<8x32xf32>
    %338 = arith.negf %337 : vector<8x32xf32>
    %339 = math.exp %338 : vector<8x32xf32>
    %cst_66 = arith.constant 1.000000e+00 : f32
    %340 = vector.broadcast %cst_66 : f32 to vector<8x32xf32>
    %341 = arith.addf %340, %339 : vector<8x32xf32>
    %342 = arith.divf %340, %341 : vector<8x32xf32>
    %343 = vector.extract_strided_slice %334 {offsets = [0, 32], sizes = [8, 32], strides = [1, 1]} : vector<8x96xf32> to vector<8x32xf32>
    %344 = vector.extract_strided_slice %330 {offsets = [0, 32], sizes = [8, 32], strides = [1, 1]} : vector<8x96xf32> to vector<8x32xf32>
    %345 = arith.addf %343, %344 : vector<8x32xf32>
    %346 = arith.negf %345 : vector<8x32xf32>
    %347 = math.exp %346 : vector<8x32xf32>
    %cst_67 = arith.constant 1.000000e+00 : f32
    %348 = vector.broadcast %cst_67 : f32 to vector<8x32xf32>
    %349 = arith.addf %348, %347 : vector<8x32xf32>
    %350 = arith.divf %348, %349 : vector<8x32xf32>
    %351 = vector.extract_strided_slice %334 {offsets = [0, 64], sizes = [8, 32], strides = [1, 1]} : vector<8x96xf32> to vector<8x32xf32>
    %352 = vector.extract_strided_slice %330 {offsets = [0, 64], sizes = [8, 32], strides = [1, 1]} : vector<8x96xf32> to vector<8x32xf32>
    %353 = arith.mulf %342, %352 : vector<8x32xf32>
    %354 = arith.addf %351, %353 : vector<8x32xf32>
    %355 = math.tanh %354 : vector<8x32xf32>
    %cst_68 = arith.constant 1.000000e+00 : f32
    %356 = vector.broadcast %cst_68 : f32 to vector<8x32xf32>
    %357 = arith.subf %356, %350 : vector<8x32xf32>
    %358 = arith.mulf %357, %355 : vector<8x32xf32>
    %359 = arith.mulf %350, %300 : vector<8x32xf32>
    %360 = arith.addf %358, %359 : vector<8x32xf32>
    %361 = vector.extract_strided_slice %21 {offsets = [16, 0], sizes = [8, 96], strides = [1, 1]} : vector<64x96xf32> to vector<8x96xf32>
    %362 = vector.extract_strided_slice %361 {offsets = [0, 0], sizes = [8, 32], strides = [1, 1]} : vector<8x96xf32> to vector<8x32xf32>
    %363 = vector.extract_strided_slice %333 {offsets = [0, 0], sizes = [8, 32], strides = [1, 1]} : vector<8x96xf32> to vector<8x32xf32>
    %364 = arith.addf %362, %363 : vector<8x32xf32>
    %365 = arith.negf %364 : vector<8x32xf32>
    %366 = math.exp %365 : vector<8x32xf32>
    %cst_69 = arith.constant 1.000000e+00 : f32
    %367 = vector.broadcast %cst_69 : f32 to vector<8x32xf32>
    %368 = arith.addf %367, %366 : vector<8x32xf32>
    %369 = arith.divf %367, %368 : vector<8x32xf32>
    %370 = vector.extract_strided_slice %361 {offsets = [0, 32], sizes = [8, 32], strides = [1, 1]} : vector<8x96xf32> to vector<8x32xf32>
    %371 = vector.extract_strided_slice %333 {offsets = [0, 32], sizes = [8, 32], strides = [1, 1]} : vector<8x96xf32> to vector<8x32xf32>
    %372 = arith.addf %370, %371 : vector<8x32xf32>
    %373 = arith.negf %372 : vector<8x32xf32>
    %374 = math.exp %373 : vector<8x32xf32>
    %cst_70 = arith.constant 1.000000e+00 : f32
    %375 = vector.broadcast %cst_70 : f32 to vector<8x32xf32>
    %376 = arith.addf %375, %374 : vector<8x32xf32>
    %377 = arith.divf %375, %376 : vector<8x32xf32>
    %378 = vector.extract_strided_slice %361 {offsets = [0, 64], sizes = [8, 32], strides = [1, 1]} : vector<8x96xf32> to vector<8x32xf32>
    %379 = vector.extract_strided_slice %333 {offsets = [0, 64], sizes = [8, 32], strides = [1, 1]} : vector<8x96xf32> to vector<8x32xf32>
    %380 = arith.mulf %369, %379 : vector<8x32xf32>
    %381 = arith.addf %378, %380 : vector<8x32xf32>
    %382 = math.tanh %381 : vector<8x32xf32>
    %cst_71 = arith.constant 1.000000e+00 : f32
    %383 = vector.broadcast %cst_71 : f32 to vector<8x32xf32>
    %384 = arith.subf %383, %377 : vector<8x32xf32>
    %385 = arith.mulf %384, %382 : vector<8x32xf32>
    %386 = arith.mulf %377, %327 : vector<8x32xf32>
    %387 = arith.addf %385, %386 : vector<8x32xf32>
    %cst_72 = arith.constant dense<0.000000e+00> : vector<8x96xf32>
    %388 = tpu.matmul %360, %22, %cst_72 {dimension_numbers = #tpu.dot_dimension_numbers<[1], [0], [0], [1], [0, 0, 1, 1], [], []>} : vector<8x32xf32>, vector<32x96xf32>, vector<8x96xf32> -> vector<8x96xf32>
    %389 = vector.broadcast %23 : vector<1x96xf32> to vector<8x96xf32>
    %390 = arith.addf %388, %389 : vector<8x96xf32>
    %cst_73 = arith.constant dense<0.000000e+00> : vector<8x96xf32>
    %391 = tpu.matmul %387, %24, %cst_73 {dimension_numbers = #tpu.dot_dimension_numbers<[1], [0], [0], [1], [0, 0, 1, 1], [], []>} : vector<8x32xf32>, vector<32x96xf32>, vector<8x96xf32> -> vector<8x96xf32>
    %392 = vector.broadcast %25 : vector<1x96xf32> to vector<8x96xf32>
    %393 = arith.addf %391, %392 : vector<8x96xf32>
    %394 = vector.extract_strided_slice %16 {offsets = [48, 0], sizes = [8, 96], strides = [1, 1]} : vector<64x96xf32> to vector<8x96xf32>
    %395 = vector.extract_strided_slice %394 {offsets = [0, 0], sizes = [8, 32], strides = [1, 1]} : vector<8x96xf32> to vector<8x32xf32>
    %396 = vector.extract_strided_slice %390 {offsets = [0, 0], sizes = [8, 32], strides = [1, 1]} : vector<8x96xf32> to vector<8x32xf32>
    %397 = arith.addf %395, %396 : vector<8x32xf32>
    %398 = arith.negf %397 : vector<8x32xf32>
    %399 = math.exp %398 : vector<8x32xf32>
    %cst_74 = arith.constant 1.000000e+00 : f32
    %400 = vector.broadcast %cst_74 : f32 to vector<8x32xf32>
    %401 = arith.addf %400, %399 : vector<8x32xf32>
    %402 = arith.divf %400, %401 : vector<8x32xf32>
    %403 = vector.extract_strided_slice %394 {offsets = [0, 32], sizes = [8, 32], strides = [1, 1]} : vector<8x96xf32> to vector<8x32xf32>
    %404 = vector.extract_strided_slice %390 {offsets = [0, 32], sizes = [8, 32], strides = [1, 1]} : vector<8x96xf32> to vector<8x32xf32>
    %405 = arith.addf %403, %404 : vector<8x32xf32>
    %406 = arith.negf %405 : vector<8x32xf32>
    %407 = math.exp %406 : vector<8x32xf32>
    %cst_75 = arith.constant 1.000000e+00 : f32
    %408 = vector.broadcast %cst_75 : f32 to vector<8x32xf32>
    %409 = arith.addf %408, %407 : vector<8x32xf32>
    %410 = arith.divf %408, %409 : vector<8x32xf32>
    %411 = vector.extract_strided_slice %394 {offsets = [0, 64], sizes = [8, 32], strides = [1, 1]} : vector<8x96xf32> to vector<8x32xf32>
    %412 = vector.extract_strided_slice %390 {offsets = [0, 64], sizes = [8, 32], strides = [1, 1]} : vector<8x96xf32> to vector<8x32xf32>
    %413 = arith.mulf %402, %412 : vector<8x32xf32>
    %414 = arith.addf %411, %413 : vector<8x32xf32>
    %415 = math.tanh %414 : vector<8x32xf32>
    %cst_76 = arith.constant 1.000000e+00 : f32
    %416 = vector.broadcast %cst_76 : f32 to vector<8x32xf32>
    %417 = arith.subf %416, %410 : vector<8x32xf32>
    %418 = arith.mulf %417, %415 : vector<8x32xf32>
    %419 = arith.mulf %410, %360 : vector<8x32xf32>
    %420 = arith.addf %418, %419 : vector<8x32xf32>
    %421 = vector.extract_strided_slice %21 {offsets = [8, 0], sizes = [8, 96], strides = [1, 1]} : vector<64x96xf32> to vector<8x96xf32>
    %422 = vector.extract_strided_slice %421 {offsets = [0, 0], sizes = [8, 32], strides = [1, 1]} : vector<8x96xf32> to vector<8x32xf32>
    %423 = vector.extract_strided_slice %393 {offsets = [0, 0], sizes = [8, 32], strides = [1, 1]} : vector<8x96xf32> to vector<8x32xf32>
    %424 = arith.addf %422, %423 : vector<8x32xf32>
    %425 = arith.negf %424 : vector<8x32xf32>
    %426 = math.exp %425 : vector<8x32xf32>
    %cst_77 = arith.constant 1.000000e+00 : f32
    %427 = vector.broadcast %cst_77 : f32 to vector<8x32xf32>
    %428 = arith.addf %427, %426 : vector<8x32xf32>
    %429 = arith.divf %427, %428 : vector<8x32xf32>
    %430 = vector.extract_strided_slice %421 {offsets = [0, 32], sizes = [8, 32], strides = [1, 1]} : vector<8x96xf32> to vector<8x32xf32>
    %431 = vector.extract_strided_slice %393 {offsets = [0, 32], sizes = [8, 32], strides = [1, 1]} : vector<8x96xf32> to vector<8x32xf32>
    %432 = arith.addf %430, %431 : vector<8x32xf32>
    %433 = arith.negf %432 : vector<8x32xf32>
    %434 = math.exp %433 : vector<8x32xf32>
    %cst_78 = arith.constant 1.000000e+00 : f32
    %435 = vector.broadcast %cst_78 : f32 to vector<8x32xf32>
    %436 = arith.addf %435, %434 : vector<8x32xf32>
    %437 = arith.divf %435, %436 : vector<8x32xf32>
    %438 = vector.extract_strided_slice %421 {offsets = [0, 64], sizes = [8, 32], strides = [1, 1]} : vector<8x96xf32> to vector<8x32xf32>
    %439 = vector.extract_strided_slice %393 {offsets = [0, 64], sizes = [8, 32], strides = [1, 1]} : vector<8x96xf32> to vector<8x32xf32>
    %440 = arith.mulf %429, %439 : vector<8x32xf32>
    %441 = arith.addf %438, %440 : vector<8x32xf32>
    %442 = math.tanh %441 : vector<8x32xf32>
    %cst_79 = arith.constant 1.000000e+00 : f32
    %443 = vector.broadcast %cst_79 : f32 to vector<8x32xf32>
    %444 = arith.subf %443, %437 : vector<8x32xf32>
    %445 = arith.mulf %444, %442 : vector<8x32xf32>
    %446 = arith.mulf %437, %387 : vector<8x32xf32>
    %447 = arith.addf %445, %446 : vector<8x32xf32>
    %cst_80 = arith.constant dense<0.000000e+00> : vector<8x96xf32>
    %448 = tpu.matmul %420, %22, %cst_80 {dimension_numbers = #tpu.dot_dimension_numbers<[1], [0], [0], [1], [0, 0, 1, 1], [], []>} : vector<8x32xf32>, vector<32x96xf32>, vector<8x96xf32> -> vector<8x96xf32>
    %449 = vector.broadcast %23 : vector<1x96xf32> to vector<8x96xf32>
    %450 = arith.addf %448, %449 : vector<8x96xf32>
    %cst_81 = arith.constant dense<0.000000e+00> : vector<8x96xf32>
    %451 = tpu.matmul %447, %24, %cst_81 {dimension_numbers = #tpu.dot_dimension_numbers<[1], [0], [0], [1], [0, 0, 1, 1], [], []>} : vector<8x32xf32>, vector<32x96xf32>, vector<8x96xf32> -> vector<8x96xf32>
    %452 = vector.broadcast %25 : vector<1x96xf32> to vector<8x96xf32>
    %453 = arith.addf %451, %452 : vector<8x96xf32>
    %454 = vector.extract_strided_slice %16 {offsets = [56, 0], sizes = [8, 96], strides = [1, 1]} : vector<64x96xf32> to vector<8x96xf32>
    %455 = vector.extract_strided_slice %454 {offsets = [0, 0], sizes = [8, 32], strides = [1, 1]} : vector<8x96xf32> to vector<8x32xf32>
    %456 = vector.extract_strided_slice %450 {offsets = [0, 0], sizes = [8, 32], strides = [1, 1]} : vector<8x96xf32> to vector<8x32xf32>
    %457 = arith.addf %455, %456 : vector<8x32xf32>
    %458 = arith.negf %457 : vector<8x32xf32>
    %459 = math.exp %458 : vector<8x32xf32>
    %cst_82 = arith.constant 1.000000e+00 : f32
    %460 = vector.broadcast %cst_82 : f32 to vector<8x32xf32>
    %461 = arith.addf %460, %459 : vector<8x32xf32>
    %462 = arith.divf %460, %461 : vector<8x32xf32>
    %463 = vector.extract_strided_slice %454 {offsets = [0, 32], sizes = [8, 32], strides = [1, 1]} : vector<8x96xf32> to vector<8x32xf32>
    %464 = vector.extract_strided_slice %450 {offsets = [0, 32], sizes = [8, 32], strides = [1, 1]} : vector<8x96xf32> to vector<8x32xf32>
    %465 = arith.addf %463, %464 : vector<8x32xf32>
    %466 = arith.negf %465 : vector<8x32xf32>
    %467 = math.exp %466 : vector<8x32xf32>
    %cst_83 = arith.constant 1.000000e+00 : f32
    %468 = vector.broadcast %cst_83 : f32 to vector<8x32xf32>
    %469 = arith.addf %468, %467 : vector<8x32xf32>
    %470 = arith.divf %468, %469 : vector<8x32xf32>
    %471 = vector.extract_strided_slice %454 {offsets = [0, 64], sizes = [8, 32], strides = [1, 1]} : vector<8x96xf32> to vector<8x32xf32>
    %472 = vector.extract_strided_slice %450 {offsets = [0, 64], sizes = [8, 32], strides = [1, 1]} : vector<8x96xf32> to vector<8x32xf32>
    %473 = arith.mulf %462, %472 : vector<8x32xf32>
    %474 = arith.addf %471, %473 : vector<8x32xf32>
    %475 = math.tanh %474 : vector<8x32xf32>
    %cst_84 = arith.constant 1.000000e+00 : f32
    %476 = vector.broadcast %cst_84 : f32 to vector<8x32xf32>
    %477 = arith.subf %476, %470 : vector<8x32xf32>
    %478 = arith.mulf %477, %475 : vector<8x32xf32>
    %479 = arith.mulf %470, %420 : vector<8x32xf32>
    %480 = arith.addf %478, %479 : vector<8x32xf32>
    %481 = vector.extract_strided_slice %21 {offsets = [0, 0], sizes = [8, 96], strides = [1, 1]} : vector<64x96xf32> to vector<8x96xf32>
    %482 = vector.extract_strided_slice %481 {offsets = [0, 0], sizes = [8, 32], strides = [1, 1]} : vector<8x96xf32> to vector<8x32xf32>
    %483 = vector.extract_strided_slice %453 {offsets = [0, 0], sizes = [8, 32], strides = [1, 1]} : vector<8x96xf32> to vector<8x32xf32>
    %484 = arith.addf %482, %483 : vector<8x32xf32>
    %485 = arith.negf %484 : vector<8x32xf32>
    %486 = math.exp %485 : vector<8x32xf32>
    %cst_85 = arith.constant 1.000000e+00 : f32
    %487 = vector.broadcast %cst_85 : f32 to vector<8x32xf32>
    %488 = arith.addf %487, %486 : vector<8x32xf32>
    %489 = arith.divf %487, %488 : vector<8x32xf32>
    %490 = vector.extract_strided_slice %481 {offsets = [0, 32], sizes = [8, 32], strides = [1, 1]} : vector<8x96xf32> to vector<8x32xf32>
    %491 = vector.extract_strided_slice %453 {offsets = [0, 32], sizes = [8, 32], strides = [1, 1]} : vector<8x96xf32> to vector<8x32xf32>
    %492 = arith.addf %490, %491 : vector<8x32xf32>
    %493 = arith.negf %492 : vector<8x32xf32>
    %494 = math.exp %493 : vector<8x32xf32>
    %cst_86 = arith.constant 1.000000e+00 : f32
    %495 = vector.broadcast %cst_86 : f32 to vector<8x32xf32>
    %496 = arith.addf %495, %494 : vector<8x32xf32>
    %497 = arith.divf %495, %496 : vector<8x32xf32>
    %498 = vector.extract_strided_slice %481 {offsets = [0, 64], sizes = [8, 32], strides = [1, 1]} : vector<8x96xf32> to vector<8x32xf32>
    %499 = vector.extract_strided_slice %453 {offsets = [0, 64], sizes = [8, 32], strides = [1, 1]} : vector<8x96xf32> to vector<8x32xf32>
    %500 = arith.mulf %489, %499 : vector<8x32xf32>
    %501 = arith.addf %498, %500 : vector<8x32xf32>
    %502 = math.tanh %501 : vector<8x32xf32>
    %cst_87 = arith.constant 1.000000e+00 : f32
    %503 = vector.broadcast %cst_87 : f32 to vector<8x32xf32>
    %504 = arith.subf %503, %497 : vector<8x32xf32>
    %505 = arith.mulf %504, %502 : vector<8x32xf32>
    %506 = arith.mulf %497, %447 : vector<8x32xf32>
    %507 = arith.addf %505, %506 : vector<8x32xf32>
    %508 = tpu.concatenate %60, %120, %180, %240, %300, %360, %420, %480 in 0 : vector<8x32xf32>, vector<8x32xf32>, vector<8x32xf32>, vector<8x32xf32>, vector<8x32xf32>, vector<8x32xf32>, vector<8x32xf32>, vector<8x32xf32> -> vector<64x32xf32>
    %509 = tpu.concatenate %507, %447, %387, %327, %267, %207, %147, %87 in 0 : vector<8x32xf32>, vector<8x32xf32>, vector<8x32xf32>, vector<8x32xf32>, vector<8x32xf32>, vector<8x32xf32>, vector<8x32xf32>, vector<8x32xf32> -> vector<64x32xf32>
    %c0_88 = arith.constant 0 : index
    %c0_89 = arith.constant 0 : index
    %510 = vector.load %arg10[%c0_88, %c0_89] : memref<64x64xf32, #tpu.memory_space<vmem>>, vector<32x64xf32>
    %cst_90 = arith.constant dense<0.000000e+00> : vector<64x64xf32>
    %511 = tpu.matmul %508, %510, %cst_90 {dimension_numbers = #tpu.dot_dimension_numbers<[1], [0], [0], [1], [0, 0, 1, 1], [], []>} : vector<64x32xf32>, vector<32x64xf32>, vector<64x64xf32> -> vector<64x64xf32>
    %c32 = arith.constant 32 : index
    %c0_91 = arith.constant 0 : index
    %512 = vector.load %arg10[%c32, %c0_91] : memref<64x64xf32, #tpu.memory_space<vmem>>, vector<32x64xf32>
    %cst_92 = arith.constant dense<0.000000e+00> : vector<64x64xf32>
    %513 = tpu.matmul %509, %512, %cst_92 {dimension_numbers = #tpu.dot_dimension_numbers<[1], [0], [0], [1], [0, 0, 1, 1], [], []>} : vector<64x32xf32>, vector<32x64xf32>, vector<64x64xf32> -> vector<64x64xf32>
    %514 = arith.addf %511, %513 : vector<64x64xf32>
    %cst_93 = arith.constant 0.000000e+00 : f32
    %515 = vector.broadcast %cst_93 : f32 to vector<64x64xf32>
    %516 = arith.maximumf %514, %515 : vector<64x64xf32>
    %517 = vector.extract_strided_slice %516 {offsets = [0, 0], sizes = [64, 32], strides = [1, 1]} : vector<64x64xf32> to vector<64x32xf32>
    %c0_94 = arith.constant 0 : index
    %c0_95 = arith.constant 0 : index
    %518 = vector.load %arg11[%c0_94, %c0_95] : memref<32x32xf32, #tpu.memory_space<vmem>>, vector<32x32xf32>
    %cst_96 = arith.constant dense<0.000000e+00> : vector<64x32xf32>
    %519 = tpu.matmul %517, %518, %cst_96 {dimension_numbers = #tpu.dot_dimension_numbers<[1], [0], [0], [1], [0, 0, 1, 1], [], []>} : vector<64x32xf32>, vector<32x32xf32>, vector<64x32xf32> -> vector<64x32xf32>
    %c0_97 = arith.constant 0 : index
    %c0_98 = arith.constant 0 : index
    %520 = vector.load %arg12[%c0_97, %c0_98] : memref<1x32xf32, #tpu.memory_space<vmem>>, vector<1x32xf32>
    %521 = vector.broadcast %520 : vector<1x32xf32> to vector<64x32xf32>
    %522 = arith.addf %519, %521 : vector<64x32xf32>
    %c0_99 = arith.constant 0 : index
    %c0_100 = arith.constant 0 : index
    %523 = vector.load %arg14[%c0_99, %c0_100] : memref<64x32xf32, #tpu.memory_space<vmem>>, vector<64x32xf32>
    tpu.vector_store %arg14[%c0_99, %c0_100], %522 {strides = array<i32>} : memref<64x32xf32, #tpu.memory_space<vmem>>, vector<64x32xf32>,
    %524 = vector.extract_strided_slice %516 {offsets = [0, 32], sizes = [64, 32], strides = [1, 1]} : vector<64x64xf32> to vector<64x32xf32>
    %c0_101 = arith.constant 0 : index
    %c0_102 = arith.constant 0 : index
    %525 = vector.load %arg15[%c0_101, %c0_102] : memref<64x32xf32, #tpu.memory_space<vmem>>, vector<64x32xf32>
    tpu.vector_store %arg15[%c0_101, %c0_102], %524 {strides = array<i32>} : memref<64x32xf32, #tpu.memory_space<vmem>>, vector<64x32xf32>,
    %cst_103 = arith.constant 0.000000e+00 : f32
    %526 = vector.broadcast %cst_103 : f32 to vector<8x120xf32>
    %c0_104 = arith.constant 0 : index
    %c0_105 = arith.constant 0 : index
    %527 = tpu.strided_load %arg14[%c0_104, %c0_105] {strides = array<i32: 8, 1>} : memref<64x32xf32, #tpu.memory_space<vmem>>, vector<8x32xf32>
    %c0_106 = arith.constant 0 : index
    %c0_107 = arith.constant 0 : index
    %528 = tpu.strided_load %arg15[%c0_106, %c0_107] {strides = array<i32: 8, 1>} : memref<64x32xf32, #tpu.memory_space<vmem>>, vector<8x32xf32>
    %cst_108 = arith.constant dense<0.000000e+00> : vector<8x8xf32>
    %529 = tpu.matmul %527, %528, %cst_108 {dimension_numbers = #tpu.dot_dimension_numbers<[1], [1], [0], [0], [0, 0, 1, 0], [], []>} : vector<8x32xf32>, vector<8x32xf32>, vector<8x8xf32> -> vector<8x8xf32>
    %530 = tpu.concatenate %529, %526 in 1 : vector<8x8xf32>, vector<8x120xf32> -> vector<8x128xf32>
    %c0_109 = arith.constant 0 : index
    %c0_110 = arith.constant 0 : index
    %c0_111 = arith.constant 0 : index
    %531 = vector.load %arg13[%c0_109, %c0_110, %c0_111] : memref<2x8x128xf32, #tpu.memory_space<vmem>>, vector<1x8x128xf32>
    %532 = vector.shape_cast %531 : vector<1x8x128xf32> to vector<8x128xf32>
    %533 = vector.shape_cast %530 : vector<8x128xf32> to vector<1x8x128xf32>
    tpu.vector_store %arg13[%c0_109, %c0_110, %c0_111], %533 {strides = array<i32>} : memref<2x8x128xf32, #tpu.memory_space<vmem>>, vector<1x8x128xf32>,
    %c1 = arith.constant 1 : index
    %c0_112 = arith.constant 0 : index
    %534 = tpu.strided_load %arg14[%c1, %c0_112] {strides = array<i32: 8, 1>} : memref<64x32xf32, #tpu.memory_space<vmem>>, vector<8x32xf32>
    %c1_113 = arith.constant 1 : index
    %c0_114 = arith.constant 0 : index
    %535 = tpu.strided_load %arg15[%c1_113, %c0_114] {strides = array<i32: 8, 1>} : memref<64x32xf32, #tpu.memory_space<vmem>>, vector<8x32xf32>
    %cst_115 = arith.constant dense<0.000000e+00> : vector<8x8xf32>
    %536 = tpu.matmul %534, %535, %cst_115 {dimension_numbers = #tpu.dot_dimension_numbers<[1], [1], [0], [0], [0, 0, 1, 0], [], []>} : vector<8x32xf32>, vector<8x32xf32>, vector<8x8xf32> -> vector<8x8xf32>
    %537 = tpu.concatenate %536, %526 in 1 : vector<8x8xf32>, vector<8x120xf32> -> vector<8x128xf32>
    %c1_116 = arith.constant 1 : index
    %c0_117 = arith.constant 0 : index
    %c0_118 = arith.constant 0 : index
    %538 = vector.load %arg13[%c1_116, %c0_117, %c0_118] : memref<2x8x128xf32, #tpu.memory_space<vmem>>, vector<1x8x128xf32>
    %539 = vector.shape_cast %538 : vector<1x8x128xf32> to vector<8x128xf32>
    %540 = vector.shape_cast %537 : vector<8x128xf32> to vector<1x8x128xf32>
    tpu.vector_store %arg13[%c1_116, %c0_117, %c0_118], %540 {strides = array<i32>} : memref<2x8x128xf32, #tpu.memory_space<vmem>>, vector<1x8x128xf32>,
    return
  }
}

</mosaic_0001>

<llo_original>
// kernel: _forward_impl.1
$region0: #{_forward_impl.1}
  #allocation0 [shape = 'u32[]', space=smem, size = 0x4, offset = 0x4, fixed_abs, tag = 'smem constant byte address 0x4 - core index']
  #allocation1 [shape = 'u32[72,128]{1,0:T(1,128)}', space=vmem, size = 0x9000, scoped, tag = 'internal scratch']
  #allocation2 [shape = 'f32[64,32]{1,0:T(8,128)}', space=vmem, size = 0x8000, scoped, tag = 'scratch operand']
  #allocation3 [shape = 'f32[64,32]{1,0:T(8,128)}', space=vmem, size = 0x8000, scoped, tag = 'scratch operand']
  %s0 = inlined_call_operand.vmem [shape: s32[64,1], index: 0, kind: input, shape index: {}]
  %s1 = inlined_call_operand.vmem [shape: s32[64,1], index: 1, kind: input, shape index: {}]
  %s2 = inlined_call_operand.vmem [shape: f32[50,96], index: 2, kind: input, shape index: {}]
  %s3 = inlined_call_operand.hbm [shape: f32[10,96], index: 3, kind: input, shape index: {}]
  %s4 = inlined_call_operand.vmem [shape: f32[50,96], index: 4, kind: input, shape index: {}]
  %s5 = inlined_call_operand.vmem [shape: f32[10,96], index: 5, kind: input, shape index: {}]
  %s6 = inlined_call_operand.hbm [shape: f32[32,96], index: 6, kind: input, shape index: {}]
  %s7 = inlined_call_operand.vmem [shape: f32[1,96], index: 7, kind: input, shape index: {}]
  %s8 = inlined_call_operand.hbm [shape: f32[32,96], index: 8, kind: input, shape index: {}]
  %s9 = inlined_call_operand.vmem [shape: f32[1,96], index: 9, kind: input, shape index: {}]
  %s10 = inlined_call_operand.vmem [shape: f32[64,64], index: 10, kind: input, shape index: {}]
  %s11 = inlined_call_operand.hbm [shape: f32[32,32], index: 11, kind: input, shape index: {}]
  %s12 = inlined_call_operand.vmem [shape: f32[1,32], index: 12, kind: input, shape index: {}]
  %s13 = inlined_call_operand.hbm [shape: f32[2,8,128], index: 13, kind: output, shape index: {}]
  %s14 = sld [smem:[#allocation0]]
  $region78: #{_forward_impl.1} parent=0
    _
  %s16 = ssub.s32 1, %s14
  %s17 = scalar_select 0, %s16, %s14
  $region1: #{_forward_impl.1} parent=0
    #allocation4 [shape = 'u8[8192]{0}', space=vmem, size = 0x2000, scoped, tag = 'input window, operand 3, single buffered']
    #allocation5 [shape = 's32[1]{0}', space=sflag, size = 0x4, scoped, tag = 'scoped memory for _forward_impl.1']
    #allocation6 [shape = 's32[1]{0}', space=sflag, size = 0x4, scoped, tag = 'scoped memory for _forward_impl.1']
    #allocation7 [shape = 'u8[16384]{0}', space=vmem, size = 0x4000, scoped, tag = 'input window, operand 6, single buffered']
    #allocation8 [shape = 's32[1]{0}', space=sflag, size = 0x4, scoped, tag = 'scoped memory for _forward_impl.1']
    #allocation9 [shape = 'u8[16384]{0}', space=vmem, size = 0x4000, scoped, tag = 'input window, operand 8, single buffered']
    #allocation10 [shape = 'u8[16384]{0}', space=vmem, size = 0x4000, scoped, tag = 'input window, operand 11, single buffered']
    #allocation11 [shape = 's32[1]{0}', space=sflag, size = 0x4, scoped, tag = 'scoped memory for _forward_impl.1']
    #allocation12 [shape = 'u8[8192]{0}', space=vmem, size = 0x2000, scoped, tag = 'output window, operand 0, single buffered']
    %18 = vsyncpa [#allocation5], 0
    %19 = vsyncpa [#allocation8], 0
    %20 = vsyncpa [#allocation11], 0
    %21 = vsyncpa [#allocation6], 0
    // Predicated region
    $region2: #{_forward_impl.1} parent=1 // pred_check
      _
    $region3: #{_forward_impl.1} parent=1 // pred_check_branch
      %23 = sbr.rel (0) target = $region5
    $region4: #{_forward_impl.1} parent=1 // pred_region
      _
    $region5: #{_forward_impl.1} parent=1 // pred_fallthru
      _
    // Predicated region
    $region6: #{_forward_impl.1} parent=1 // pred_check
      _
    $region7: #{_forward_impl.1} parent=1 // pred_check_branch
      %25 = sbr.rel (0) target = $region9
    $region8: #{_forward_impl.1} parent=1 // pred_region
      _
    $region9: #{_forward_impl.1} parent=1 // pred_fallthru
      _
    // Predicated region
    $region10: #{_forward_impl.1} parent=1 // pred_check
      _
    $region11: #{_forward_impl.1} parent=1 // pred_check_branch
      %27 = sbr.rel (0) target = $region13
    $region12: #{_forward_impl.1} parent=1 // pred_region
      _
    $region13: #{_forward_impl.1} parent=1 // pred_fallthru
      _
    // Predicated region
    $region14: #{_forward_impl.1} parent=1 // pred_check
      _
    $region15: #{_forward_impl.1} parent=1 // pred_check_branch
      %29 = sbr.rel (0) target = $region17
    $region16: #{_forward_impl.1} parent=1 // pred_region
      %31 = vsyncadd [#allocation5], 0
      %s32 = sshll.u32 %s3, 4
      %s33 = int_to_ptr.hbm [resolvable:$true] %s32
      %s34 = sshll.u32 [#allocation4], 4
      %s35 = int_to_ptr.vmem [resolvable:$true] %s34
      %40 = dma.hbm_to_vmem [thread:$0]  %s33, 256, %s35, [#allocation5], 128, 128, 8
    $region17: #{_forward_impl.1} parent=1 // pred_fallthru
      _
    // Predicated region
    $region18: #{_forward_impl.1} parent=1 // pred_check
      _
    $region19: #{_forward_impl.1} parent=1 // pred_check_branch
      %42 = sbr.rel (0) target = $region21
    $region20: #{_forward_impl.1} parent=1 // pred_region
      _
    $region21: #{_forward_impl.1} parent=1 // pred_fallthru
      _
    // Predicated region
    $region22: #{_forward_impl.1} parent=1 // pred_check
      _
    $region23: #{_forward_impl.1} parent=1 // pred_check_branch
      %44 = sbr.rel (0) target = $region25
    $region24: #{_forward_impl.1} parent=1 // pred_region
      _
    $region25: #{_forward_impl.1} parent=1 // pred_fallthru
      _
    // Predicated region
    $region26: #{_forward_impl.1} parent=1 // pred_check
      _
    $region27: #{_forward_impl.1} parent=1 // pred_check_branch
      %46 = sbr.rel (0) target = $region29
    $region28: #{_forward_impl.1} parent=1 // pred_region
      %48 = vsyncadd [#allocation8], 0
      %s49 = sshll.u32 %s6, 4
      %s50 = int_to_ptr.hbm [resolvable:$true] %s49
      %s51 = sshll.u32 [#allocation7], 4
      %s52 = int_to_ptr.vmem [resolvable:$true] %s51
      %57 = dma.hbm_to_vmem [thread:$0]  %s50, 512, %s52, [#allocation8], 128, 128, 8
    $region29: #{_forward_impl.1} parent=1 // pred_fallthru
      _
    // Predicated region
    $region30: #{_forward_impl.1} parent=1 // pred_check
      _
    $region31: #{_forward_impl.1} parent=1 // pred_check_branch
      %59 = sbr.rel (0) target = $region33
    $region32: #{_forward_impl.1} parent=1 // pred_region
      _
    $region33: #{_forward_impl.1} parent=1 // pred_fallthru
      _
    // Predicated region
    $region34: #{_forward_impl.1} parent=1 // pred_check
      _
    $region35: #{_forward_impl.1} parent=1 // pred_check_branch
      %61 = sbr.rel (0) target = $region37
    $region36: #{_forward_impl.1} parent=1 // pred_region
      %63 = vsyncadd [#allocation8], 0
      %s64 = sshll.u32 %s8, 4
      %s65 = int_to_ptr.hbm [resolvable:$true] %s64
      %s66 = sshll.u32 [#allocation9], 4
      %s67 = int_to_ptr.vmem [resolvable:$true] %s66
      %72 = dma.hbm_to_vmem [thread:$0]  %s65, 512, %s67, [#allocation8], 128, 128, 8
    $region37: #{_forward_impl.1} parent=1 // pred_fallthru
      _
    // Predicated region
    $region38: #{_forward_impl.1} parent=1 // pred_check
      _
    $region39: #{_forward_impl.1} parent=1 // pred_check_branch
      %74 = sbr.rel (0) target = $region41
    $region40: #{_forward_impl.1} parent=1 // pred_region
      _
    $region41: #{_forward_impl.1} parent=1 // pred_fallthru
      _
    // Predicated region
    $region42: #{_forward_impl.1} parent=1 // pred_check
      _
    $region43: #{_forward_impl.1} parent=1 // pred_check_branch
      %76 = sbr.rel (0) target = $region45
    $region44: #{_forward_impl.1} parent=1 // pred_region
      _
    $region45: #{_forward_impl.1} parent=1 // pred_fallthru
      _
    // Predicated region
    $region46: #{_forward_impl.1} parent=1 // pred_check
      _
    $region47: #{_forward_impl.1} parent=1 // pred_check_branch
      %78 = sbr.rel (0) target = $region49
    $region48: #{_forward_impl.1} parent=1 // pred_region
      %80 = vsyncadd [#allocation11], 0
      %s81 = sshll.u32 %s11, 4
      %s82 = int_to_ptr.hbm [resolvable:$true] %s81
      %s83 = sshll.u32 [#allocation10], 4
      %s84 = int_to_ptr.vmem [resolvable:$true] %s83
      %89 = dma.hbm_to_vmem [thread:$0]  %s82, 512, %s84, [#allocation11], 128, 128, 8
    $region49: #{_forward_impl.1} parent=1 // pred_fallthru
      _
    // Predicated region
    $region50: #{_forward_impl.1} parent=1 // pred_check
      _
    $region51: #{_forward_impl.1} parent=1 // pred_check_branch
      %91 = sbr.rel (0) target = $region53
    $region52: #{_forward_impl.1} parent=1 // pred_region
      _
    $region53: #{_forward_impl.1} parent=1 // pred_fallthru
      _
    // Predicated region
    $region54: #{_forward_impl.1} parent=1 // pred_check
      _
    $region55: #{_forward_impl.1} parent=1 // pred_check_branch
      %93 = sbr.rel (0) target = $region57
    $region56: #{_forward_impl.1} parent=1 // pred_region
      %95 = dma.done [#allocation5], 256
    $region57: #{_forward_impl.1} parent=1 // pred_fallthru
      _
    // Predicated region
    $region58: #{_forward_impl.1} parent=1 // pred_check
      _
    $region59: #{_forward_impl.1} parent=1 // pred_check_branch
      %97 = sbr.rel (0) target = $region61
    $region60: #{_forward_impl.1} parent=1 // pred_region
      %99 = dma.done [#allocation8], 512
    $region61: #{_forward_impl.1} parent=1 // pred_fallthru
      _
    // Predicated region
    $region62: #{_forward_impl.1} parent=1 // pred_check
      _
    $region63: #{_forward_impl.1} parent=1 // pred_check_branch
      %101 = sbr.rel (0) target = $region65
    $region64: #{_forward_impl.1} parent=1 // pred_region
      %103 = dma.done [#allocation8], 512
    $region65: #{_forward_impl.1} parent=1 // pred_fallthru
      _
    // Predicated region
    $region66: #{_forward_impl.1} parent=1 // pred_check
      _
    $region67: #{_forward_impl.1} parent=1 // pred_check_branch
      %105 = sbr.rel (0) target = $region69
    $region68: #{_forward_impl.1} parent=1 // pred_region
      %107 = dma.done [#allocation11], 512
    $region69: #{_forward_impl.1} parent=1 // pred_fallthru
      _
    %v108 = vlaneseq
    %v109 = vand.u32 %v108, 127
    %v110 = vld [vmem:[%s0] sm:$0xff]
    %v111 = vld [vmem:[%s0 + $0x8] sm:$0xff]
    %v112 = vld [vmem:[%s0 + $0x10] sm:$0xff]
    %v113 = vld [vmem:[%s0 + $0x18] sm:$0xff]
    %v114 = vld [vmem:[%s0 + $0x20] sm:$0xff]
    %v115 = vld [vmem:[%s0 + $0x28] sm:$0xff]
    %v116 = vld [vmem:[%s0 + $0x30] sm:$0xff]
    %v117 = vld [vmem:[%s0 + $0x38] sm:$0xff]
    %118 = vset.pattern.permute.xlu0 0
    %119 = vperm.xlu0 %118, %v110
    %v120 = vpop.permute.xlu0 %119
    %121 = vset.pattern.permute.xlu0 0
    %122 = vperm.xlu0 %121, %v111
    %v123 = vpop.permute.xlu0 %122
    %124 = vset.pattern.permute.xlu0 0
    %125 = vperm.xlu0 %124, %v112
    %v126 = vpop.permute.xlu0 %125
    %127 = vset.pattern.permute.xlu0 0
    %128 = vperm.xlu0 %127, %v113
    %v129 = vpop.permute.xlu0 %128
    %130 = vset.pattern.permute.xlu0 0
    %131 = vperm.xlu0 %130, %v114
    %v132 = vpop.permute.xlu0 %131
    %133 = vset.pattern.permute.xlu0 0
    %134 = vperm.xlu0 %133, %v115
    %v135 = vpop.permute.xlu0 %134
    %136 = vset.pattern.permute.xlu0 0
    %137 = vperm.xlu0 %136, %v116
    %v138 = vpop.permute.xlu0 %137
    %139 = vset.pattern.permute.xlu0 0
    %140 = vperm.xlu0 %139, %v117
    %v141 = vpop.permute.xlu0 %140
    %vm142 = vcmp.eq.s32.totalorder %v109, %v120
    %vm143 = vcmp.eq.s32.totalorder %v109, %v123
    %vm144 = vcmp.eq.s32.totalorder %v109, %v126
    %vm145 = vcmp.eq.s32.totalorder %v109, %v129
    %vm146 = vcmp.eq.s32.totalorder %v109, %v132
    %vm147 = vcmp.eq.s32.totalorder %v109, %v135
    %vm148 = vcmp.eq.s32.totalorder %v109, %v138
    %vm149 = vcmp.eq.s32.totalorder %v109, %v141
    %v150 = vsel %vm142, 1, 0
    %v151 = vsel %vm143, 1, 0
    %v152 = vsel %vm144, 1, 0
    %v153 = vsel %vm145, 1, 0
    %v154 = vsel %vm146, 1, 0
    %v155 = vsel %vm147, 1, 0
    %v156 = vsel %vm148, 1, 0
    %v157 = vsel %vm149, 1, 0
    %v158 = vcvt.s32.f32 %v150
    %v159 = vcvt.s32.f32 %v151
    %v160 = vcvt.s32.f32 %v152
    %v161 = vcvt.s32.f32 %v153
    %v162 = vcvt.s32.f32 %v154
    %v163 = vcvt.s32.f32 %v155
    %v164 = vcvt.s32.f32 %v156
    %v165 = vcvt.s32.f32 %v157
    %v166 = vld [vmem:[%s1] sm:$0xff]
    %v167 = vld [vmem:[%s1 + $0x8] sm:$0xff]
    %v168 = vld [vmem:[%s1 + $0x10] sm:$0xff]
    %v169 = vld [vmem:[%s1 + $0x18] sm:$0xff]
    %v170 = vld [vmem:[%s1 + $0x20] sm:$0xff]
    %v171 = vld [vmem:[%s1 + $0x28] sm:$0xff]
    %v172 = vld [vmem:[%s1 + $0x30] sm:$0xff]
    %v173 = vld [vmem:[%s1 + $0x38] sm:$0xff]
    %174 = vset.pattern.permute.xlu0 0
    %175 = vperm.xlu0 %174, %v166
    %v176 = vpop.permute.xlu0 %175
    %177 = vset.pattern.permute.xlu0 0
    %178 = vperm.xlu0 %177, %v167
    %v179 = vpop.permute.xlu0 %178
    %180 = vset.pattern.permute.xlu0 0
    %181 = vperm.xlu0 %180, %v168
    %v182 = vpop.permute.xlu0 %181
    %183 = vset.pattern.permute.xlu0 0
    %184 = vperm.xlu0 %183, %v169
    %v185 = vpop.permute.xlu0 %184
    %186 = vset.pattern.permute.xlu0 0
    %187 = vperm.xlu0 %186, %v170
    %v188 = vpop.permute.xlu0 %187
    %189 = vset.pattern.permute.xlu0 0
    %190 = vperm.xlu0 %189, %v171
    %v191 = vpop.permute.xlu0 %190
    %192 = vset.pattern.permute.xlu0 0
    %193 = vperm.xlu0 %192, %v172
    %v194 = vpop.permute.xlu0 %193
    %195 = vset.pattern.permute.xlu0 0
    %196 = vperm.xlu0 %195, %v173
    %v197 = vpop.permute.xlu0 %196
    %vm198 = vcmp.eq.s32.totalorder %v109, %v176
    %vm199 = vcmp.eq.s32.totalorder %v109, %v179
    %vm200 = vcmp.eq.s32.totalorder %v109, %v182
    %vm201 = vcmp.eq.s32.totalorder %v109, %v185
    %vm202 = vcmp.eq.s32.totalorder %v109, %v188
    %vm203 = vcmp.eq.s32.totalorder %v109, %v191
    %vm204 = vcmp.eq.s32.totalorder %v109, %v194
    %vm205 = vcmp.eq.s32.totalorder %v109, %v197
    %v206 = vsel %vm198, 1, 0
    %v207 = vsel %vm199, 1, 0
    %v208 = vsel %vm200, 1, 0
    %v209 = vsel %vm201, 1, 0
    %v210 = vsel %vm202, 1, 0
    %v211 = vsel %vm203, 1, 0
    %v212 = vsel %vm204, 1, 0
    %v213 = vsel %vm205, 1, 0
    %v214 = vcvt.s32.f32 %v206
    %v215 = vcvt.s32.f32 %v207
    %v216 = vcvt.s32.f32 %v208
    %v217 = vcvt.s32.f32 %v209
    %v218 = vcvt.s32.f32 %v210
    %v219 = vcvt.s32.f32 %v211
    %v220 = vcvt.s32.f32 %v212
    %v221 = vcvt.s32.f32 %v213
    %v222 = vld [vmem:[%s2] sm:$0xff]
    %v223 = vld [vmem:[%s2 + $0x8] sm:$0xff]
    %v224 = vld [vmem:[%s2 + $0x10] sm:$0xff]
    %v225 = vld [vmem:[%s2 + $0x18] sm:$0xff]
    %v226 = vld [vmem:[%s2 + $0x20] sm:$0xff]
    %v227 = vld [vmem:[%s2 + $0x28] sm:$0xff]
    %v228 = vld [vmem:[%s2 + $0x30] sm:$0x3]
    %v229 = vld [vmem:[#allocation4] sm:$0xff]
    %v230 = vld [vmem:[#allocation4 + $0x8] sm:$0x3]
    %vm231 = vcmask 80896
    %v233 = vsel %vm231, %v214, 0
    %v236 = vsel %vm231, %v215, 0
    %v239 = vsel %vm231, %v216, 0
    %v242 = vsel %vm231, %v217, 0
    %v245 = vsel %vm231, %v218, 0
    %v248 = vsel %vm231, %v219, 0
    %v251 = vsel %vm231, %v220, 0
    %v254 = vsel %vm231, %v221, 0
    %vm256 = vcmask 1041408
    %v258 = vsel %vm256, %v230, 0
    %260 = vmatpush.msra.mxu0 0.0
    %261 = vmatpush.msra.mxu0 0.0
    %262 = vmatpush.msra.mxu0 0.0
    %263 = vmatpush.msra.mxu0 0.0
    %264 = vmatpush.msra.mxu0 0.0
    %265 = vmatpush.msra.mxu0 0.0
    %266 = vmatpush.msra.mxu0 0.0
    %267 = vmatpush.msra.mxu0 0.0
    %268 = vmatpush.msra.mxu0 0.0
    %269 = vmatpush.msra.mxu0 0.0
    %270 = vmatpush.msra.mxu0 0.0
    %271 = vmatpush.msra.mxu0 0.0
    %272 = vmatpush.msra.mxu0 0.0
    %273 = vmatpush.msra.mxu0 0.0
    %274 = vmatpush.msra.mxu0 %v258
    %275 = vmatpush.msra.mxu0 %v229
    %276 = vmatmul.f32.gmra.mxu0 %v233
    %v277 = vpop.f32.mrf.mxu0
    %v278 = vadd.f32 0.0, %v277
    %279 = vmatmul.f32.gmra.mxu0 %v236
    %v280 = vpop.f32.mrf.mxu0
    %v281 = vadd.f32 0.0, %v280
    %282 = vmatmul.f32.gmra.mxu0 %v239
    %v283 = vpop.f32.mrf.mxu0
    %v284 = vadd.f32 0.0, %v283
    %285 = vmatmul.f32.gmra.mxu0 %v242
    %v286 = vpop.f32.mrf.mxu0
    %v287 = vadd.f32 0.0, %v286
    %288 = vmatmul.f32.gmra.mxu0 %v245
    %v289 = vpop.f32.mrf.mxu0
    %v290 = vadd.f32 0.0, %v289
    %291 = vmatmul.f32.gmra.mxu0 %v248
    %v292 = vpop.f32.mrf.mxu0
    %v293 = vadd.f32 0.0, %v292
    %294 = vmatmul.f32.gmra.mxu0 %v251
    %v295 = vpop.f32.mrf.mxu0
    %v296 = vadd.f32 0.0, %v295
    %297 = vmatmul.f32.gmra.mxu0 %v254
    %v298 = vpop.f32.mrf.mxu0
    %v299 = vadd.f32 0.0, %v298
    %300 = vdwg.mxu0
    %vm301 = vcmask 408576
    %v303 = vsel %vm301, %v158, 0
    %v306 = vsel %vm301, %v159, 0
    %v309 = vsel %vm301, %v160, 0
    %v312 = vsel %vm301, %v161, 0
    %v315 = vsel %vm301, %v162, 0
    %v318 = vsel %vm301, %v163, 0
    %v321 = vsel %vm301, %v164, 0
    %v324 = vsel %vm301, %v165, 0
    %v327 = vsel %vm256, %v228, 0
    %329 = vmatpush.msra.mxu0 0.0
    %330 = vmatpush.msra.mxu0 0.0
    %331 = vmatpush.msra.mxu0 0.0
    %332 = vmatpush.msra.mxu0 0.0
    %333 = vmatpush.msra.mxu0 0.0
    %334 = vmatpush.msra.mxu0 0.0
    %335 = vmatpush.msra.mxu0 0.0
    %336 = vmatpush.msra.mxu0 0.0
    %337 = vmatpush.msra.mxu0 0.0
    %338 = vmatpush.msra.mxu0 %v327
    %339 = vmatpush.msra.mxu0 %v227
    %340 = vmatpush.msra.mxu0 %v226
    %341 = vmatpush.msra.mxu0 %v225
    %342 = vmatpush.msra.mxu0 %v224
    %343 = vmatpush.msra.mxu0 %v223
    %344 = vmatpush.msra.mxu0 %v222
    %345 = vmatmul.f32.gmra.mxu0 %v303
    %v346 = vpop.f32.mrf.mxu0
    %v347 = vadd.f32 %v278, %v346
    %348 = vmatmul.f32.gmra.mxu0 %v306
    %v349 = vpop.f32.mrf.mxu0
    %v350 = vadd.f32 %v281, %v349
    %351 = vmatmul.f32.gmra.mxu0 %v309
    %v352 = vpop.f32.mrf.mxu0
    %v353 = vadd.f32 %v284, %v352
    %354 = vmatmul.f32.gmra.mxu0 %v312
    %v355 = vpop.f32.mrf.mxu0
    %v356 = vadd.f32 %v287, %v355
    %357 = vmatmul.f32.gmra.mxu0 %v315
    %v358 = vpop.f32.mrf.mxu0
    %v359 = vadd.f32 %v290, %v358
    %360 = vmatmul.f32.gmra.mxu0 %v318
    %v361 = vpop.f32.mrf.mxu0
    %v362 = vadd.f32 %v293, %v361
    %363 = vmatmul.f32.gmra.mxu0 %v321
    %v364 = vpop.f32.mrf.mxu0
    %v365 = vadd.f32 %v296, %v364
    %366 = vmatmul.f32.gmra.mxu0 %v324
    %v367 = vpop.f32.mrf.mxu0
    %v368 = vadd.f32 %v299, %v367
    %369 = vdwg.mxu0
    %v370 = vld [vmem:[%s4] sm:$0xff]
    %v371 = vld [vmem:[%s4 + $0x8] sm:$0xff]
    %v372 = vld [vmem:[%s4 + $0x10] sm:$0xff]
    %v373 = vld [vmem:[%s4 + $0x18] sm:$0xff]
    %v374 = vld [vmem:[%s4 + $0x20] sm:$0xff]
    %v375 = vld [vmem:[%s4 + $0x28] sm:$0xff]
    %v376 = vld [vmem:[%s4 + $0x30] sm:$0x3]
    %v377 = vld [vmem:[%s5] sm:$0xff]
    %v378 = vld [vmem:[%s5 + $0x8] sm:$0x3]
    %v380 = vsel %vm256, %v378, 0
    %382 = vmatpush.msra.mxu0 0.0
    %383 = vmatpush.msra.mxu0 0.0
    %384 = vmatpush.msra.mxu0 0.0
    %385 = vmatpush.msra.mxu0 0.0
    %386 = vmatpush.msra.mxu0 0.0
    %387 = vmatpush.msra.mxu0 0.0
    %388 = vmatpush.msra.mxu0 0.0
    %389 = vmatpush.msra.mxu0 0.0
    %390 = vmatpush.msra.mxu0 0.0
    %391 = vmatpush.msra.mxu0 0.0
    %392 = vmatpush.msra.mxu0 0.0
    %393 = vmatpush.msra.mxu0 0.0
    %394 = vmatpush.msra.mxu0 0.0
    %395 = vmatpush.msra.mxu0 0.0
    %396 = vmatpush.msra.mxu0 %v380
    %397 = vmatpush.msra.mxu0 %v377
    %398 = vmatmul.f32.gmra.mxu0 %v233
    %v399 = vpop.f32.mrf.mxu0
    %v400 = vadd.f32 0.0, %v399
    %401 = vmatmul.f32.gmra.mxu0 %v236
    %v402 = vpop.f32.mrf.mxu0
    %v403 = vadd.f32 0.0, %v402
    %404 = vmatmul.f32.gmra.mxu0 %v239
    %v405 = vpop.f32.mrf.mxu0
    %v406 = vadd.f32 0.0, %v405
    %407 = vmatmul.f32.gmra.mxu0 %v242
    %v408 = vpop.f32.mrf.mxu0
    %v409 = vadd.f32 0.0, %v408
    %410 = vmatmul.f32.gmra.mxu0 %v245
    %v411 = vpop.f32.mrf.mxu0
    %v412 = vadd.f32 0.0, %v411
    %413 = vmatmul.f32.gmra.mxu0 %v248
    %v414 = vpop.f32.mrf.mxu0
    %v415 = vadd.f32 0.0, %v414
    %416 = vmatmul.f32.gmra.mxu0 %v251
    %v417 = vpop.f32.mrf.mxu0
    %v418 = vadd.f32 0.0, %v417
    %419 = vmatmul.f32.gmra.mxu0 %v254
    %v420 = vpop.f32.mrf.mxu0
    %v421 = vadd.f32 0.0, %v420
    %422 = vdwg.mxu0
    %v424 = vsel %vm256, %v376, 0
    %426 = vmatpush.msra.mxu0 0.0
    %427 = vmatpush.msra.mxu0 0.0
    %428 = vmatpush.msra.mxu0 0.0
    %429 = vmatpush.msra.mxu0 0.0
    %430 = vmatpush.msra.mxu0 0.0
    %431 = vmatpush.msra.mxu0 0.0
    %432 = vmatpush.msra.mxu0 0.0
    %433 = vmatpush.msra.mxu0 0.0
    %434 = vmatpush.msra.mxu0 0.0
    %435 = vmatpush.msra.mxu0 %v424
    %436 = vmatpush.msra.mxu0 %v375
    %437 = vmatpush.msra.mxu0 %v374
    %438 = vmatpush.msra.mxu0 %v373
    %439 = vmatpush.msra.mxu0 %v372
    %440 = vmatpush.msra.mxu0 %v371
    %441 = vmatpush.msra.mxu0 %v370
    %442 = vmatmul.f32.gmra.mxu0 %v303
    %v443 = vpop.f32.mrf.mxu0
    %v444 = vadd.f32 %v400, %v443
    %445 = vmatmul.f32.gmra.mxu0 %v306
    %v446 = vpop.f32.mrf.mxu0
    %v447 = vadd.f32 %v403, %v446
    %448 = vmatmul.f32.gmra.mxu0 %v309
    %v449 = vpop.f32.mrf.mxu0
    %v450 = vadd.f32 %v406, %v449
    %451 = vmatmul.f32.gmra.mxu0 %v312
    %v452 = vpop.f32.mrf.mxu0
    %v453 = vadd.f32 %v409, %v452
    %454 = vmatmul.f32.gmra.mxu0 %v315
    %v455 = vpop.f32.mrf.mxu0
    %v456 = vadd.f32 %v412, %v455
    %457 = vmatmul.f32.gmra.mxu0 %v318
    %v458 = vpop.f32.mrf.mxu0
    %v459 = vadd.f32 %v415, %v458
    %460 = vmatmul.f32.gmra.mxu0 %v321
    %v461 = vpop.f32.mrf.mxu0
    %v462 = vadd.f32 %v418, %v461
    %463 = vmatmul.f32.gmra.mxu0 %v324
    %v464 = vpop.f32.mrf.mxu0
    %v465 = vadd.f32 %v421, %v464
    %466 = vdwg.mxu0
    %v467 = vld [vmem:[#allocation7] sm:$0xff]
    %v468 = vld [vmem:[#allocation7 + $0x8] sm:$0xff]
    %v469 = vld [vmem:[#allocation7 + $0x10] sm:$0xff]
    %v470 = vld [vmem:[#allocation7 + $0x18] sm:$0xff]
    %v471 = vld [vmem:[%s7] sm:$0x1]
    %v472 = vld [vmem:[#allocation9] sm:$0xff]
    %v473 = vld [vmem:[#allocation9 + $0x8] sm:$0xff]
    %v474 = vld [vmem:[#allocation9 + $0x10] sm:$0xff]
    %v475 = vld [vmem:[#allocation9 + $0x18] sm:$0xff]
    %v476 = vld [vmem:[%s9] sm:$0x1]
    %v478 = vperm.slane %v471, 0
    %vm480 = vcmask 261120
    %v482 = vsel %vm480, 0.0, 0
    %484 = vmatpush.msra.mxu0 0.0
    %485 = vmatpush.msra.mxu0 0.0
    %486 = vmatpush.msra.mxu0 0.0
    %487 = vmatpush.msra.mxu0 0.0
    %488 = vmatpush.msra.mxu0 0.0
    %489 = vmatpush.msra.mxu0 0.0
    %490 = vmatpush.msra.mxu0 0.0
    %491 = vmatpush.msra.mxu0 0.0
    %492 = vmatpush.msra.mxu0 0.0
    %493 = vmatpush.msra.mxu0 0.0
    %494 = vmatpush.msra.mxu0 0.0
    %495 = vmatpush.msra.mxu0 0.0
    %496 = vmatpush.msra.mxu0 %v470
    %497 = vmatpush.msra.mxu0 %v469
    %498 = vmatpush.msra.mxu0 %v468
    %499 = vmatpush.msra.mxu0 %v467
    %500 = vmatmul.f32.gmra.mxu0 %v482
    %v501 = vpop.f32.mrf.mxu0
    %v502 = vadd.f32 %v478, %v501
    %503 = vdwg.mxu0
    %v505 = vperm.slane %v476, 0
    %507 = vmatpush.msra.mxu0 0.0
    %508 = vmatpush.msra.mxu0 0.0
    %509 = vmatpush.msra.mxu0 0.0
    %510 = vmatpush.msra.mxu0 0.0
    %511 = vmatpush.msra.mxu0 0.0
    %512 = vmatpush.msra.mxu0 0.0
    %513 = vmatpush.msra.mxu0 0.0
    %514 = vmatpush.msra.mxu0 0.0
    %515 = vmatpush.msra.mxu0 0.0
    %516 = vmatpush.msra.mxu0 0.0
    %517 = vmatpush.msra.mxu0 0.0
    %518 = vmatpush.msra.mxu0 0.0
    %519 = vmatpush.msra.mxu0 %v475
    %520 = vmatpush.msra.mxu0 %v474
    %521 = vmatpush.msra.mxu0 %v473
    %522 = vmatpush.msra.mxu0 %v472
    %523 = vmatmul.f32.gmra.mxu0 %v482
    %v524 = vpop.f32.mrf.mxu0
    %v525 = vadd.f32 %v505, %v524
    %526 = vdwg.mxu0
    %v527 = vadd.f32 %v347, %v502
    %v528 = vxor.u32 %v527, 2147483648
    %v529 = vmul.f32 %v528, 1.442695
    %v530 = vpow.pop %v529
    %v531 = vadd.f32 %v530, 1.0
    %v532 = vrcp.pop %v531
    %v533 = vmul.f32 %v531, %v532
    %v534 = vsub.f32 1.0, %v533
    %v535 = vmul.f32 %v532, %v534
    %v536 = vadd.f32 %v532, %v535
    %vm537 = vweird.f32 %v531
    %vm538 = vweird.f32 %v532
    %vm539 = vmor %vm537, %vm538
    %v540 = vsel %vm539, %v532, %v536
    %v541 = vand.u32 2147483647, %v531
    %vm542 = vcmp.eq.f32.partialorder %v541, 8.507059e+37
    %v543 = vand.u32 %v531, 2147483648
    %v544 = vor.u32 1.1754944e-38, %v543
    %v545 = vsel %vm542, %v544, %v540
    %v546 = vmul.f32 1.0, %v545
    %548 = vrot.lane.b32.xlu0 %v502, 64
    %v549 = vpop.permute.xlu0 %548
    %v551 = vmul.f32 %v546, %v549
    %553 = vrot.lane.b32.xlu0 %v551, 64
    %v554 = vpop.permute.xlu0 %553
    %v556 = vadd.f32 %v347, %v554
    %v557 = vtanh.pop %v556
    %v558 = vsub.f32 1.0, %v546
    %560 = vrot.lane.b32.xlu0 %v557, 96
    %v561 = vpop.permute.xlu0 %560
    %v563 = vmul.f32 %v558, %v561
    %v564 = vmul.f32 %v546, 0.0
    %v565 = vadd.f32 %v563, %v564
    %v566 = vadd.f32 %v465, %v525
    %v567 = vxor.u32 %v566, 2147483648
    %v568 = vmul.f32 %v567, 1.442695
    %v569 = vpow.pop %v568
    %v570 = vadd.f32 %v569, 1.0
    %v571 = vrcp.pop %v570
    %v572 = vmul.f32 %v570, %v571
    %v573 = vsub.f32 1.0, %v572
    %v574 = vmul.f32 %v571, %v573
    %v575 = vadd.f32 %v571, %v574
    %vm576 = vweird.f32 %v570
    %vm577 = vweird.f32 %v571
    %vm578 = vmor %vm576, %vm577
    %v579 = vsel %vm578, %v571, %v575
    %v580 = vand.u32 2147483647, %v570
    %vm581 = vcmp.eq.f32.partialorder %v580, 8.507059e+37
    %v582 = vand.u32 %v570, 2147483648
    %v583 = vor.u32 1.1754944e-38, %v582
    %v584 = vsel %vm581, %v583, %v579
    %v585 = vmul.f32 1.0, %v584
    %587 = vrot.lane.b32.xlu0 %v525, 64
    %v588 = vpop.permute.xlu0 %587
    %v590 = vmul.f32 %v585, %v588
    %592 = vrot.lane.b32.xlu0 %v590, 64
    %v593 = vpop.permute.xlu0 %592
    %v595 = vadd.f32 %v465, %v593
    %v596 = vtanh.pop %v595
    %v597 = vsub.f32 1.0, %v585
    %599 = vrot.lane.b32.xlu0 %v596, 96
    %v600 = vpop.permute.xlu0 %599
    %v602 = vmul.f32 %v597, %v600
    %v603 = vmul.f32 %v585, 0.0
    %v604 = vadd.f32 %v602, %v603
    %606 = vrot.lane.b32.xlu0 %v565, 96
    %v607 = vpop.permute.xlu0 %606
    %v608 = vsel %vm480, %v607, 0
    %610 = vmatpush.msra.mxu0 0.0
    %611 = vmatpush.msra.mxu0 0.0
    %612 = vmatpush.msra.mxu0 0.0
    %613 = vmatpush.msra.mxu0 0.0
    %614 = vmatpush.msra.mxu0 0.0
    %615 = vmatpush.msra.mxu0 0.0
    %616 = vmatpush.msra.mxu0 0.0
    %617 = vmatpush.msra.mxu0 0.0
    %618 = vmatpush.msra.mxu0 0.0
    %619 = vmatpush.msra.mxu0 0.0
    %620 = vmatpush.msra.mxu0 0.0
    %621 = vmatpush.msra.mxu0 0.0
    %622 = vmatpush.msra.mxu0 %v470
    %623 = vmatpush.msra.mxu0 %v469
    %624 = vmatpush.msra.mxu0 %v468
    %625 = vmatpush.msra.mxu0 %v467
    %626 = vmatmul.f32.gmra.mxu0 %v608
    %v627 = vpop.f32.mrf.mxu0
    %v628 = vadd.f32 %v478, %v627
    %629 = vdwg.mxu0
    %631 = vrot.lane.b32.xlu0 %v604, 96
    %v632 = vpop.permute.xlu0 %631
    %v633 = vsel %vm480, %v632, 0
    %635 = vmatpush.msra.mxu0 0.0
    %636 = vmatpush.msra.mxu0 0.0
    %637 = vmatpush.msra.mxu0 0.0
    %638 = vmatpush.msra.mxu0 0.0
    %639 = vmatpush.msra.mxu0 0.0
    %640 = vmatpush.msra.mxu0 0.0
    %641 = vmatpush.msra.mxu0 0.0
    %642 = vmatpush.msra.mxu0 0.0
    %643 = vmatpush.msra.mxu0 0.0
    %644 = vmatpush.msra.mxu0 0.0
    %645 = vmatpush.msra.mxu0 0.0
    %646 = vmatpush.msra.mxu0 0.0
    %647 = vmatpush.msra.mxu0 %v475
    %648 = vmatpush.msra.mxu0 %v474
    %649 = vmatpush.msra.mxu0 %v473
    %650 = vmatpush.msra.mxu0 %v472
    %651 = vmatmul.f32.gmra.mxu0 %v633
    %v652 = vpop.f32.mrf.mxu0
    %v653 = vadd.f32 %v505, %v652
    %654 = vdwg.mxu0
    %v655 = vadd.f32 %v350, %v628
    %v656 = vxor.u32 %v655, 2147483648
    %v657 = vmul.f32 %v656, 1.442695
    %v658 = vpow.pop %v657
    %v659 = vadd.f32 %v658, 1.0
    %v660 = vrcp.pop %v659
    %v661 = vmul.f32 %v659, %v660
    %v662 = vsub.f32 1.0, %v661
    %v663 = vmul.f32 %v660, %v662
    %v664 = vadd.f32 %v660, %v663
    %vm665 = vweird.f32 %v659
    %vm666 = vweird.f32 %v660
    %vm667 = vmor %vm665, %vm666
    %v668 = vsel %vm667, %v660, %v664
    %v669 = vand.u32 2147483647, %v659
    %vm670 = vcmp.eq.f32.partialorder %v669, 8.507059e+37
    %v671 = vand.u32 %v659, 2147483648
    %v672 = vor.u32 1.1754944e-38, %v671
    %v673 = vsel %vm670, %v672, %v668
    %v674 = vmul.f32 1.0, %v673
    %676 = vrot.lane.b32.xlu0 %v628, 64
    %v677 = vpop.permute.xlu0 %676
    %v679 = vmul.f32 %v674, %v677
    %681 = vrot.lane.b32.xlu0 %v679, 64
    %v682 = vpop.permute.xlu0 %681
    %v684 = vadd.f32 %v350, %v682
    %v685 = vtanh.pop %v684
    %v686 = vsub.f32 1.0, %v674
    %688 = vrot.lane.b32.xlu0 %v685, 96
    %v689 = vpop.permute.xlu0 %688
    %v691 = vmul.f32 %v686, %v689
    %v692 = vmul.f32 %v674, %v565
    %v693 = vadd.f32 %v691, %v692
    %v694 = vadd.f32 %v462, %v653
    %v695 = vxor.u32 %v694, 2147483648
    %v696 = vmul.f32 %v695, 1.442695
    %v697 = vpow.pop %v696
    %v698 = vadd.f32 %v697, 1.0
    %v699 = vrcp.pop %v698
    %v700 = vmul.f32 %v698, %v699
    %v701 = vsub.f32 1.0, %v700
    %v702 = vmul.f32 %v699, %v701
    %v703 = vadd.f32 %v699, %v702
    %vm704 = vweird.f32 %v698
    %vm705 = vweird.f32 %v699
    %vm706 = vmor %vm704, %vm705
    %v707 = vsel %vm706, %v699, %v703
    %v708 = vand.u32 2147483647, %v698
    %vm709 = vcmp.eq.f32.partialorder %v708, 8.507059e+37
    %v710 = vand.u32 %v698, 2147483648
    %v711 = vor.u32 1.1754944e-38, %v710
    %v712 = vsel %vm709, %v711, %v707
    %v713 = vmul.f32 1.0, %v712
    %715 = vrot.lane.b32.xlu0 %v653, 64
    %v716 = vpop.permute.xlu0 %715
    %v718 = vmul.f32 %v713, %v716
    %720 = vrot.lane.b32.xlu0 %v718, 64
    %v721 = vpop.permute.xlu0 %720
    %v723 = vadd.f32 %v462, %v721
    %v724 = vtanh.pop %v723
    %v725 = vsub.f32 1.0, %v713
    %727 = vrot.lane.b32.xlu0 %v724, 96
    %v728 = vpop.permute.xlu0 %727
    %v730 = vmul.f32 %v725, %v728
    %v731 = vmul.f32 %v713, %v604
    %v732 = vadd.f32 %v730, %v731
    %734 = vrot.lane.b32.xlu0 %v693, 96
    %v735 = vpop.permute.xlu0 %734
    %v736 = vsel %vm480, %v735, 0
    %738 = vmatpush.msra.mxu0 0.0
    %739 = vmatpush.msra.mxu0 0.0
    %740 = vmatpush.msra.mxu0 0.0
    %741 = vmatpush.msra.mxu0 0.0
    %742 = vmatpush.msra.mxu0 0.0
    %743 = vmatpush.msra.mxu0 0.0
    %744 = vmatpush.msra.mxu0 0.0
    %745 = vmatpush.msra.mxu0 0.0
    %746 = vmatpush.msra.mxu0 0.0
    %747 = vmatpush.msra.mxu0 0.0
    %748 = vmatpush.msra.mxu0 0.0
    %749 = vmatpush.msra.mxu0 0.0
    %750 = vmatpush.msra.mxu0 %v470
    %751 = vmatpush.msra.mxu0 %v469
    %752 = vmatpush.msra.mxu0 %v468
    %753 = vmatpush.msra.mxu0 %v467
    %754 = vmatmul.f32.gmra.mxu0 %v736
    %v755 = vpop.f32.mrf.mxu0
    %v756 = vadd.f32 %v478, %v755
    %757 = vdwg.mxu0
    %759 = vrot.lane.b32.xlu0 %v732, 96
    %v760 = vpop.permute.xlu0 %759
    %v761 = vsel %vm480, %v760, 0
    %763 = vmatpush.msra.mxu0 0.0
    %764 = vmatpush.msra.mxu0 0.0
    %765 = vmatpush.msra.mxu0 0.0
    %766 = vmatpush.msra.mxu0 0.0
    %767 = vmatpush.msra.mxu0 0.0
    %768 = vmatpush.msra.mxu0 0.0
    %769 = vmatpush.msra.mxu0 0.0
    %770 = vmatpush.msra.mxu0 0.0
    %771 = vmatpush.msra.mxu0 0.0
    %772 = vmatpush.msra.mxu0 0.0
    %773 = vmatpush.msra.mxu0 0.0
    %774 = vmatpush.msra.mxu0 0.0
    %775 = vmatpush.msra.mxu0 %v475
    %776 = vmatpush.msra.mxu0 %v474
    %777 = vmatpush.msra.mxu0 %v473
    %778 = vmatpush.msra.mxu0 %v472
    %779 = vmatmul.f32.gmra.mxu0 %v761
    %v780 = vpop.f32.mrf.mxu0
    %v781 = vadd.f32 %v505, %v780
    %782 = vdwg.mxu0
    %v783 = vadd.f32 %v353, %v756
    %v784 = vxor.u32 %v783, 2147483648
    %v785 = vmul.f32 %v784, 1.442695
    %v786 = vpow.pop %v785
    %v787 = vadd.f32 %v786, 1.0
    %v788 = vrcp.pop %v787
    %v789 = vmul.f32 %v787, %v788
    %v790 = vsub.f32 1.0, %v789
    %v791 = vmul.f32 %v788, %v790
    %v792 = vadd.f32 %v788, %v791
    %vm793 = vweird.f32 %v787
    %vm794 = vweird.f32 %v788
    %vm795 = vmor %vm793, %vm794
    %v796 = vsel %vm795, %v788, %v792
    %v797 = vand.u32 2147483647, %v787
    %vm798 = vcmp.eq.f32.partialorder %v797, 8.507059e+37
    %v799 = vand.u32 %v787, 2147483648
    %v800 = vor.u32 1.1754944e-38, %v799
    %v801 = vsel %vm798, %v800, %v796
    %v802 = vmul.f32 1.0, %v801
    %804 = vrot.lane.b32.xlu0 %v756, 64
    %v805 = vpop.permute.xlu0 %804
    %v807 = vmul.f32 %v802, %v805
    %809 = vrot.lane.b32.xlu0 %v807, 64
    %v810 = vpop.permute.xlu0 %809
    %v812 = vadd.f32 %v353, %v810
    %v813 = vtanh.pop %v812
    %v814 = vsub.f32 1.0, %v802
    %816 = vrot.lane.b32.xlu0 %v813, 96
    %v817 = vpop.permute.xlu0 %816
    %v819 = vmul.f32 %v814, %v817
    %v820 = vmul.f32 %v802, %v693
    %v821 = vadd.f32 %v819, %v820
    %v822 = vadd.f32 %v459, %v781
    %v823 = vxor.u32 %v822, 2147483648
    %v824 = vmul.f32 %v823, 1.442695
    %v825 = vpow.pop %v824
    %v826 = vadd.f32 %v825, 1.0
    %v827 = vrcp.pop %v826
    %v828 = vmul.f32 %v826, %v827
    %v829 = vsub.f32 1.0, %v828
    %v830 = vmul.f32 %v827, %v829
    %v831 = vadd.f32 %v827, %v830
    %vm832 = vweird.f32 %v826
    %vm833 = vweird.f32 %v827
    %vm834 = vmor %vm832, %vm833
    %v835 = vsel %vm834, %v827, %v831
    %v836 = vand.u32 2147483647, %v826
    %vm837 = vcmp.eq.f32.partialorder %v836, 8.507059e+37
    %v838 = vand.u32 %v826, 2147483648
    %v839 = vor.u32 1.1754944e-38, %v838
    %v840 = vsel %vm837, %v839, %v835
    %v841 = vmul.f32 1.0, %v840
    %843 = vrot.lane.b32.xlu0 %v781, 64
    %v844 = vpop.permute.xlu0 %843
    %v846 = vmul.f32 %v841, %v844
    %848 = vrot.lane.b32.xlu0 %v846, 64
    %v849 = vpop.permute.xlu0 %848
    %v851 = vadd.f32 %v459, %v849
    %v852 = vtanh.pop %v851
    %v853 = vsub.f32 1.0, %v841
    %855 = vrot.lane.b32.xlu0 %v852, 96
    %v856 = vpop.permute.xlu0 %855
    %v858 = vmul.f32 %v853, %v856
    %v859 = vmul.f32 %v841, %v732
    %v860 = vadd.f32 %v858, %v859
    %862 = vrot.lane.b32.xlu0 %v821, 96
    %v863 = vpop.permute.xlu0 %862
    %v864 = vsel %vm480, %v863, 0
    %866 = vmatpush.msra.mxu0 0.0
    %867 = vmatpush.msra.mxu0 0.0
    %868 = vmatpush.msra.mxu0 0.0
    %869 = vmatpush.msra.mxu0 0.0
    %870 = vmatpush.msra.mxu0 0.0
    %871 = vmatpush.msra.mxu0 0.0
    %872 = vmatpush.msra.mxu0 0.0
    %873 = vmatpush.msra.mxu0 0.0
    %874 = vmatpush.msra.mxu0 0.0
    %875 = vmatpush.msra.mxu0 0.0
    %876 = vmatpush.msra.mxu0 0.0
    %877 = vmatpush.msra.mxu0 0.0
    %878 = vmatpush.msra.mxu0 %v470
    %879 = vmatpush.msra.mxu0 %v469
    %880 = vmatpush.msra.mxu0 %v468
    %881 = vmatpush.msra.mxu0 %v467
    %882 = vmatmul.f32.gmra.mxu0 %v864
    %v883 = vpop.f32.mrf.mxu0
    %v884 = vadd.f32 %v478, %v883
    %885 = vdwg.mxu0
    %887 = vrot.lane.b32.xlu0 %v860, 96
    %v888 = vpop.permute.xlu0 %887
    %v889 = vsel %vm480, %v888, 0
    %891 = vmatpush.msra.mxu0 0.0
    %892 = vmatpush.msra.mxu0 0.0
    %893 = vmatpush.msra.mxu0 0.0
    %894 = vmatpush.msra.mxu0 0.0
    %895 = vmatpush.msra.mxu0 0.0
    %896 = vmatpush.msra.mxu0 0.0
    %897 = vmatpush.msra.mxu0 0.0
    %898 = vmatpush.msra.mxu0 0.0
    %899 = vmatpush.msra.mxu0 0.0
    %900 = vmatpush.msra.mxu0 0.0
    %901 = vmatpush.msra.mxu0 0.0
    %902 = vmatpush.msra.mxu0 0.0
    %903 = vmatpush.msra.mxu0 %v475
    %904 = vmatpush.msra.mxu0 %v474
    %905 = vmatpush.msra.mxu0 %v473
    %906 = vmatpush.msra.mxu0 %v472
    %907 = vmatmul.f32.gmra.mxu0 %v889
    %v908 = vpop.f32.mrf.mxu0
    %v909 = vadd.f32 %v505, %v908
    %910 = vdwg.mxu0
    %v911 = vadd.f32 %v356, %v884
    %v912 = vxor.u32 %v911, 2147483648
    %v913 = vmul.f32 %v912, 1.442695
    %v914 = vpow.pop %v913
    %v915 = vadd.f32 %v914, 1.0
    %v916 = vrcp.pop %v915
    %v917 = vmul.f32 %v915, %v916
    %v918 = vsub.f32 1.0, %v917
    %v919 = vmul.f32 %v916, %v918
    %v920 = vadd.f32 %v916, %v919
    %vm921 = vweird.f32 %v915
    %vm922 = vweird.f32 %v916
    %vm923 = vmor %vm921, %vm922
    %v924 = vsel %vm923, %v916, %v920
    %v925 = vand.u32 2147483647, %v915
    %vm926 = vcmp.eq.f32.partialorder %v925, 8.507059e+37
    %v927 = vand.u32 %v915, 2147483648
    %v928 = vor.u32 1.1754944e-38, %v927
    %v929 = vsel %vm926, %v928, %v924
    %v930 = vmul.f32 1.0, %v929
    %932 = vrot.lane.b32.xlu0 %v884, 64
    %v933 = vpop.permute.xlu0 %932
    %v935 = vmul.f32 %v930, %v933
    %937 = vrot.lane.b32.xlu0 %v935, 64
    %v938 = vpop.permute.xlu0 %937
    %v940 = vadd.f32 %v356, %v938
    %v941 = vtanh.pop %v940
    %v942 = vsub.f32 1.0, %v930
    %944 = vrot.lane.b32.xlu0 %v941, 96
    %v945 = vpop.permute.xlu0 %944
    %v947 = vmul.f32 %v942, %v945
    %v948 = vmul.f32 %v930, %v821
    %v949 = vadd.f32 %v947, %v948
    %v950 = vadd.f32 %v456, %v909
    %v951 = vxor.u32 %v950, 2147483648
    %v952 = vmul.f32 %v951, 1.442695
    %v953 = vpow.pop %v952
    %v954 = vadd.f32 %v953, 1.0
    %v955 = vrcp.pop %v954
    %v956 = vmul.f32 %v954, %v955
    %v957 = vsub.f32 1.0, %v956
    %v958 = vmul.f32 %v955, %v957
    %v959 = vadd.f32 %v955, %v958
    %vm960 = vweird.f32 %v954
    %vm961 = vweird.f32 %v955
    %vm962 = vmor %vm960, %vm961
    %v963 = vsel %vm962, %v955, %v959
    %v964 = vand.u32 2147483647, %v954
    %vm965 = vcmp.eq.f32.partialorder %v964, 8.507059e+37
    %v966 = vand.u32 %v954, 2147483648
    %v967 = vor.u32 1.1754944e-38, %v966
    %v968 = vsel %vm965, %v967, %v963
    %v969 = vmul.f32 1.0, %v968
    %971 = vrot.lane.b32.xlu0 %v909, 64
    %v972 = vpop.permute.xlu0 %971
    %v974 = vmul.f32 %v969, %v972
    %976 = vrot.lane.b32.xlu0 %v974, 64
    %v977 = vpop.permute.xlu0 %976
    %v979 = vadd.f32 %v456, %v977
    %v980 = vtanh.pop %v979
    %v981 = vsub.f32 1.0, %v969
    %983 = vrot.lane.b32.xlu0 %v980, 96
    %v984 = vpop.permute.xlu0 %983
    %v986 = vmul.f32 %v981, %v984
    %v987 = vmul.f32 %v969, %v860
    %v988 = vadd.f32 %v986, %v987
    %990 = vrot.lane.b32.xlu0 %v949, 96
    %v991 = vpop.permute.xlu0 %990
    %v992 = vsel %vm480, %v991, 0
    %994 = vmatpush.msra.mxu0 0.0
    %995 = vmatpush.msra.mxu0 0.0
    %996 = vmatpush.msra.mxu0 0.0
    %997 = vmatpush.msra.mxu0 0.0
    %998 = vmatpush.msra.mxu0 0.0
    %999 = vmatpush.msra.mxu0 0.0
    %1000 = vmatpush.msra.mxu0 0.0
    %1001 = vmatpush.msra.mxu0 0.0
    %1002 = vmatpush.msra.mxu0 0.0
    %1003 = vmatpush.msra.mxu0 0.0
    %1004 = vmatpush.msra.mxu0 0.0
    %1005 = vmatpush.msra.mxu0 0.0
    %1006 = vmatpush.msra.mxu0 %v470
    %1007 = vmatpush.msra.mxu0 %v469
    %1008 = vmatpush.msra.mxu0 %v468
    %1009 = vmatpush.msra.mxu0 %v467
    %1010 = vmatmul.f32.gmra.mxu0 %v992
    %v1011 = vpop.f32.mrf.mxu0
    %v1012 = vadd.f32 %v478, %v1011
    %1013 = vdwg.mxu0
    %1015 = vrot.lane.b32.xlu0 %v988, 96
    %v1016 = vpop.permute.xlu0 %1015
    %v1017 = vsel %vm480, %v1016, 0
    %1019 = vmatpush.msra.mxu0 0.0
    %1020 = vmatpush.msra.mxu0 0.0
    %1021 = vmatpush.msra.mxu0 0.0
    %1022 = vmatpush.msra.mxu0 0.0
    %1023 = vmatpush.msra.mxu0 0.0
    %1024 = vmatpush.msra.mxu0 0.0
    %1025 = vmatpush.msra.mxu0 0.0
    %1026 = vmatpush.msra.mxu0 0.0
    %1027 = vmatpush.msra.mxu0 0.0
    %1028 = vmatpush.msra.mxu0 0.0
    %1029 = vmatpush.msra.mxu0 0.0
    %1030 = vmatpush.msra.mxu0 0.0
    %1031 = vmatpush.msra.mxu0 %v475
    %1032 = vmatpush.msra.mxu0 %v474
    %1033 = vmatpush.msra.mxu0 %v473
    %1034 = vmatpush.msra.mxu0 %v472
    %1035 = vmatmul.f32.gmra.mxu0 %v1017
    %v1036 = vpop.f32.mrf.mxu0
    %v1037 = vadd.f32 %v505, %v1036
    %1038 = vdwg.mxu0
    %v1039 = vadd.f32 %v359, %v1012
    %v1040 = vxor.u32 %v1039, 2147483648
    %v1041 = vmul.f32 %v1040, 1.442695
    %v1042 = vpow.pop %v1041
    %v1043 = vadd.f32 %v1042, 1.0
    %v1044 = vrcp.pop %v1043
    %v1045 = vmul.f32 %v1043, %v1044
    %v1046 = vsub.f32 1.0, %v1045
    %v1047 = vmul.f32 %v1044, %v1046
    %v1048 = vadd.f32 %v1044, %v1047
    %vm1049 = vweird.f32 %v1043
    %vm1050 = vweird.f32 %v1044
    %vm1051 = vmor %vm1049, %vm1050
    %v1052 = vsel %vm1051, %v1044, %v1048
    %v1053 = vand.u32 2147483647, %v1043
    %vm1054 = vcmp.eq.f32.partialorder %v1053, 8.507059e+37
    %v1055 = vand.u32 %v1043, 2147483648
    %v1056 = vor.u32 1.1754944e-38, %v1055
    %v1057 = vsel %vm1054, %v1056, %v1052
    %v1058 = vmul.f32 1.0, %v1057
    %1060 = vrot.lane.b32.xlu0 %v1012, 64
    %v1061 = vpop.permute.xlu0 %1060
    %v1063 = vmul.f32 %v1058, %v1061
    %1065 = vrot.lane.b32.xlu0 %v1063, 64
    %v1066 = vpop.permute.xlu0 %1065
    %v1068 = vadd.f32 %v359, %v1066
    %v1069 = vtanh.pop %v1068
    %v1070 = vsub.f32 1.0, %v1058
    %1072 = vrot.lane.b32.xlu0 %v1069, 96
    %v1073 = vpop.permute.xlu0 %1072
    %v1075 = vmul.f32 %v1070, %v1073
    %v1076 = vmul.f32 %v1058, %v949
    %v1077 = vadd.f32 %v1075, %v1076
    %v1078 = vadd.f32 %v453, %v1037
    %v1079 = vxor.u32 %v1078, 2147483648
    %v1080 = vmul.f32 %v1079, 1.442695
    %v1081 = vpow.pop %v1080
    %v1082 = vadd.f32 %v1081, 1.0
    %v1083 = vrcp.pop %v1082
    %v1084 = vmul.f32 %v1082, %v1083
    %v1085 = vsub.f32 1.0, %v1084
    %v1086 = vmul.f32 %v1083, %v1085
    %v1087 = vadd.f32 %v1083, %v1086
    %vm1088 = vweird.f32 %v1082
    %vm1089 = vweird.f32 %v1083
    %vm1090 = vmor %vm1088, %vm1089
    %v1091 = vsel %vm1090, %v1083, %v1087
    %v1092 = vand.u32 2147483647, %v1082
    %vm1093 = vcmp.eq.f32.partialorder %v1092, 8.507059e+37
    %v1094 = vand.u32 %v1082, 2147483648
    %v1095 = vor.u32 1.1754944e-38, %v1094
    %v1096 = vsel %vm1093, %v1095, %v1091
    %v1097 = vmul.f32 1.0, %v1096
    %1099 = vrot.lane.b32.xlu0 %v1037, 64
    %v1100 = vpop.permute.xlu0 %1099
    %v1102 = vmul.f32 %v1097, %v1100
    %1104 = vrot.lane.b32.xlu0 %v1102, 64
    %v1105 = vpop.permute.xlu0 %1104
    %v1107 = vadd.f32 %v453, %v1105
    %v1108 = vtanh.pop %v1107
    %v1109 = vsub.f32 1.0, %v1097
    %1111 = vrot.lane.b32.xlu0 %v1108, 96
    %v1112 = vpop.permute.xlu0 %1111
    %v1114 = vmul.f32 %v1109, %v1112
    %v1115 = vmul.f32 %v1097, %v988
    %v1116 = vadd.f32 %v1114, %v1115
    %1118 = vrot.lane.b32.xlu0 %v1077, 96
    %v1119 = vpop.permute.xlu0 %1118
    %v1120 = vsel %vm480, %v1119, 0
    %1122 = vmatpush.msra.mxu0 0.0
    %1123 = vmatpush.msra.mxu0 0.0
    %1124 = vmatpush.msra.mxu0 0.0
    %1125 = vmatpush.msra.mxu0 0.0
    %1126 = vmatpush.msra.mxu0 0.0
    %1127 = vmatpush.msra.mxu0 0.0
    %1128 = vmatpush.msra.mxu0 0.0
    %1129 = vmatpush.msra.mxu0 0.0
    %1130 = vmatpush.msra.mxu0 0.0
    %1131 = vmatpush.msra.mxu0 0.0
    %1132 = vmatpush.msra.mxu0 0.0
    %1133 = vmatpush.msra.mxu0 0.0
    %1134 = vmatpush.msra.mxu0 %v470
    %1135 = vmatpush.msra.mxu0 %v469
    %1136 = vmatpush.msra.mxu0 %v468
    %1137 = vmatpush.msra.mxu0 %v467
    %1138 = vmatmul.f32.gmra.mxu0 %v1120
    %v1139 = vpop.f32.mrf.mxu0
    %v1140 = vadd.f32 %v478, %v1139
    %1141 = vdwg.mxu0
    %1143 = vrot.lane.b32.xlu0 %v1116, 96
    %v1144 = vpop.permute.xlu0 %1143
    %v1145 = vsel %vm480, %v1144, 0
    %1147 = vmatpush.msra.mxu0 0.0
    %1148 = vmatpush.msra.mxu0 0.0
    %1149 = vmatpush.msra.mxu0 0.0
    %1150 = vmatpush.msra.mxu0 0.0
    %1151 = vmatpush.msra.mxu0 0.0
    %1152 = vmatpush.msra.mxu0 0.0
    %1153 = vmatpush.msra.mxu0 0.0
    %1154 = vmatpush.msra.mxu0 0.0
    %1155 = vmatpush.msra.mxu0 0.0
    %1156 = vmatpush.msra.mxu0 0.0
    %1157 = vmatpush.msra.mxu0 0.0
    %1158 = vmatpush.msra.mxu0 0.0
    %1159 = vmatpush.msra.mxu0 %v475
    %1160 = vmatpush.msra.mxu0 %v474
    %1161 = vmatpush.msra.mxu0 %v473
    %1162 = vmatpush.msra.mxu0 %v472
    %1163 = vmatmul.f32.gmra.mxu0 %v1145
    %v1164 = vpop.f32.mrf.mxu0
    %v1165 = vadd.f32 %v505, %v1164
    %1166 = vdwg.mxu0
    %v1167 = vadd.f32 %v362, %v1140
    %v1168 = vxor.u32 %v1167, 2147483648
    %v1169 = vmul.f32 %v1168, 1.442695
    %v1170 = vpow.pop %v1169
    %v1171 = vadd.f32 %v1170, 1.0
    %v1172 = vrcp.pop %v1171
    %v1173 = vmul.f32 %v1171, %v1172
    %v1174 = vsub.f32 1.0, %v1173
    %v1175 = vmul.f32 %v1172, %v1174
    %v1176 = vadd.f32 %v1172, %v1175
    %vm1177 = vweird.f32 %v1171
    %vm1178 = vweird.f32 %v1172
    %vm1179 = vmor %vm1177, %vm1178
    %v1180 = vsel %vm1179, %v1172, %v1176
    %v1181 = vand.u32 2147483647, %v1171
    %vm1182 = vcmp.eq.f32.partialorder %v1181, 8.507059e+37
    %v1183 = vand.u32 %v1171, 2147483648
    %v1184 = vor.u32 1.1754944e-38, %v1183
    %v1185 = vsel %vm1182, %v1184, %v1180
    %v1186 = vmul.f32 1.0, %v1185
    %1188 = vrot.lane.b32.xlu0 %v1140, 64
    %v1189 = vpop.permute.xlu0 %1188
    %v1191 = vmul.f32 %v1186, %v1189
    %1193 = vrot.lane.b32.xlu0 %v1191, 64
    %v1194 = vpop.permute.xlu0 %1193
    %v1196 = vadd.f32 %v362, %v1194
    %v1197 = vtanh.pop %v1196
    %v1198 = vsub.f32 1.0, %v1186
    %1200 = vrot.lane.b32.xlu0 %v1197, 96
    %v1201 = vpop.permute.xlu0 %1200
    %v1203 = vmul.f32 %v1198, %v1201
    %v1204 = vmul.f32 %v1186, %v1077
    %v1205 = vadd.f32 %v1203, %v1204
    %v1206 = vadd.f32 %v450, %v1165
    %v1207 = vxor.u32 %v1206, 2147483648
    %v1208 = vmul.f32 %v1207, 1.442695
    %v1209 = vpow.pop %v1208
    %v1210 = vadd.f32 %v1209, 1.0
    %v1211 = vrcp.pop %v1210
    %v1212 = vmul.f32 %v1210, %v1211
    %v1213 = vsub.f32 1.0, %v1212
    %v1214 = vmul.f32 %v1211, %v1213
    %v1215 = vadd.f32 %v1211, %v1214
    %vm1216 = vweird.f32 %v1210
    %vm1217 = vweird.f32 %v1211
    %vm1218 = vmor %vm1216, %vm1217
    %v1219 = vsel %vm1218, %v1211, %v1215
    %v1220 = vand.u32 2147483647, %v1210
    %vm1221 = vcmp.eq.f32.partialorder %v1220, 8.507059e+37
    %v1222 = vand.u32 %v1210, 2147483648
    %v1223 = vor.u32 1.1754944e-38, %v1222
    %v1224 = vsel %vm1221, %v1223, %v1219
    %v1225 = vmul.f32 1.0, %v1224
    %1227 = vrot.lane.b32.xlu0 %v1165, 64
    %v1228 = vpop.permute.xlu0 %1227
    %v1230 = vmul.f32 %v1225, %v1228
    %1232 = vrot.lane.b32.xlu0 %v1230, 64
    %v1233 = vpop.permute.xlu0 %1232
    %v1235 = vadd.f32 %v450, %v1233
    %v1236 = vtanh.pop %v1235
    %v1237 = vsub.f32 1.0, %v1225
    %1239 = vrot.lane.b32.xlu0 %v1236, 96
    %v1240 = vpop.permute.xlu0 %1239
    %v1242 = vmul.f32 %v1237, %v1240
    %v1243 = vmul.f32 %v1225, %v1116
    %v1244 = vadd.f32 %v1242, %v1243
    %1246 = vrot.lane.b32.xlu0 %v1205, 96
    %v1247 = vpop.permute.xlu0 %1246
    %v1248 = vsel %vm480, %v1247, 0
    %1250 = vmatpush.msra.mxu0 0.0
    %1251 = vmatpush.msra.mxu0 0.0
    %1252 = vmatpush.msra.mxu0 0.0
    %1253 = vmatpush.msra.mxu0 0.0
    %1254 = vmatpush.msra.mxu0 0.0
    %1255 = vmatpush.msra.mxu0 0.0
    %1256 = vmatpush.msra.mxu0 0.0
    %1257 = vmatpush.msra.mxu0 0.0
    %1258 = vmatpush.msra.mxu0 0.0
    %1259 = vmatpush.msra.mxu0 0.0
    %1260 = vmatpush.msra.mxu0 0.0
    %1261 = vmatpush.msra.mxu0 0.0
    %1262 = vmatpush.msra.mxu0 %v470
    %1263 = vmatpush.msra.mxu0 %v469
    %1264 = vmatpush.msra.mxu0 %v468
    %1265 = vmatpush.msra.mxu0 %v467
    %1266 = vmatmul.f32.gmra.mxu0 %v1248
    %v1267 = vpop.f32.mrf.mxu0
    %v1268 = vadd.f32 %v478, %v1267
    %1269 = vdwg.mxu0
    %1271 = vrot.lane.b32.xlu0 %v1244, 96
    %v1272 = vpop.permute.xlu0 %1271
    %v1273 = vsel %vm480, %v1272, 0
    %1275 = vmatpush.msra.mxu0 0.0
    %1276 = vmatpush.msra.mxu0 0.0
    %1277 = vmatpush.msra.mxu0 0.0
    %1278 = vmatpush.msra.mxu0 0.0
    %1279 = vmatpush.msra.mxu0 0.0
    %1280 = vmatpush.msra.mxu0 0.0
    %1281 = vmatpush.msra.mxu0 0.0
    %1282 = vmatpush.msra.mxu0 0.0
    %1283 = vmatpush.msra.mxu0 0.0
    %1284 = vmatpush.msra.mxu0 0.0
    %1285 = vmatpush.msra.mxu0 0.0
    %1286 = vmatpush.msra.mxu0 0.0
    %1287 = vmatpush.msra.mxu0 %v475
    %1288 = vmatpush.msra.mxu0 %v474
    %1289 = vmatpush.msra.mxu0 %v473
    %1290 = vmatpush.msra.mxu0 %v472
    %1291 = vmatmul.f32.gmra.mxu0 %v1273
    %v1292 = vpop.f32.mrf.mxu0
    %v1293 = vadd.f32 %v505, %v1292
    %1294 = vdwg.mxu0
    %v1295 = vadd.f32 %v365, %v1268
    %v1296 = vxor.u32 %v1295, 2147483648
    %v1297 = vmul.f32 %v1296, 1.442695
    %v1298 = vpow.pop %v1297
    %v1299 = vadd.f32 %v1298, 1.0
    %v1300 = vrcp.pop %v1299
    %v1301 = vmul.f32 %v1299, %v1300
    %v1302 = vsub.f32 1.0, %v1301
    %v1303 = vmul.f32 %v1300, %v1302
    %v1304 = vadd.f32 %v1300, %v1303
    %vm1305 = vweird.f32 %v1299
    %vm1306 = vweird.f32 %v1300
    %vm1307 = vmor %vm1305, %vm1306
    %v1308 = vsel %vm1307, %v1300, %v1304
    %v1309 = vand.u32 2147483647, %v1299
    %vm1310 = vcmp.eq.f32.partialorder %v1309, 8.507059e+37
    %v1311 = vand.u32 %v1299, 2147483648
    %v1312 = vor.u32 1.1754944e-38, %v1311
    %v1313 = vsel %vm1310, %v1312, %v1308
    %v1314 = vmul.f32 1.0, %v1313
    %1316 = vrot.lane.b32.xlu0 %v1268, 64
    %v1317 = vpop.permute.xlu0 %1316
    %v1319 = vmul.f32 %v1314, %v1317
    %1321 = vrot.lane.b32.xlu0 %v1319, 64
    %v1322 = vpop.permute.xlu0 %1321
    %v1324 = vadd.f32 %v365, %v1322
    %v1325 = vtanh.pop %v1324
    %v1326 = vsub.f32 1.0, %v1314
    %1328 = vrot.lane.b32.xlu0 %v1325, 96
    %v1329 = vpop.permute.xlu0 %1328
    %v1331 = vmul.f32 %v1326, %v1329
    %v1332 = vmul.f32 %v1314, %v1205
    %v1333 = vadd.f32 %v1331, %v1332
    %v1334 = vadd.f32 %v447, %v1293
    %v1335 = vxor.u32 %v1334, 2147483648
    %v1336 = vmul.f32 %v1335, 1.442695
    %v1337 = vpow.pop %v1336
    %v1338 = vadd.f32 %v1337, 1.0
    %v1339 = vrcp.pop %v1338
    %v1340 = vmul.f32 %v1338, %v1339
    %v1341 = vsub.f32 1.0, %v1340
    %v1342 = vmul.f32 %v1339, %v1341
    %v1343 = vadd.f32 %v1339, %v1342
    %vm1344 = vweird.f32 %v1338
    %vm1345 = vweird.f32 %v1339
    %vm1346 = vmor %vm1344, %vm1345
    %v1347 = vsel %vm1346, %v1339, %v1343
    %v1348 = vand.u32 2147483647, %v1338
    %vm1349 = vcmp.eq.f32.partialorder %v1348, 8.507059e+37
    %v1350 = vand.u32 %v1338, 2147483648
    %v1351 = vor.u32 1.1754944e-38, %v1350
    %v1352 = vsel %vm1349, %v1351, %v1347
    %v1353 = vmul.f32 1.0, %v1352
    %1355 = vrot.lane.b32.xlu0 %v1293, 64
    %v1356 = vpop.permute.xlu0 %1355
    %v1358 = vmul.f32 %v1353, %v1356
    %1360 = vrot.lane.b32.xlu0 %v1358, 64
    %v1361 = vpop.permute.xlu0 %1360
    %v1363 = vadd.f32 %v447, %v1361
    %v1364 = vtanh.pop %v1363
    %v1365 = vsub.f32 1.0, %v1353
    %1367 = vrot.lane.b32.xlu0 %v1364, 96
    %v1368 = vpop.permute.xlu0 %1367
    %v1370 = vmul.f32 %v1365, %v1368
    %v1371 = vmul.f32 %v1353, %v1244
    %v1372 = vadd.f32 %v1370, %v1371
    %1374 = vrot.lane.b32.xlu0 %v1333, 96
    %v1375 = vpop.permute.xlu0 %1374
    %v1376 = vsel %vm480, %v1375, 0
    %1378 = vmatpush.msra.mxu0 0.0
    %1379 = vmatpush.msra.mxu0 0.0
    %1380 = vmatpush.msra.mxu0 0.0
    %1381 = vmatpush.msra.mxu0 0.0
    %1382 = vmatpush.msra.mxu0 0.0
    %1383 = vmatpush.msra.mxu0 0.0
    %1384 = vmatpush.msra.mxu0 0.0
    %1385 = vmatpush.msra.mxu0 0.0
    %1386 = vmatpush.msra.mxu0 0.0
    %1387 = vmatpush.msra.mxu0 0.0
    %1388 = vmatpush.msra.mxu0 0.0
    %1389 = vmatpush.msra.mxu0 0.0
    %1390 = vmatpush.msra.mxu0 %v470
    %1391 = vmatpush.msra.mxu0 %v469
    %1392 = vmatpush.msra.mxu0 %v468
    %1393 = vmatpush.msra.mxu0 %v467
    %1394 = vmatmul.f32.gmra.mxu0 %v1376
    %v1395 = vpop.f32.mrf.mxu0
    %v1396 = vadd.f32 %v478, %v1395
    %1397 = vdwg.mxu0
    %1399 = vrot.lane.b32.xlu0 %v1372, 96
    %v1400 = vpop.permute.xlu0 %1399
    %v1401 = vsel %vm480, %v1400, 0
    %1403 = vmatpush.msra.mxu0 0.0
    %1404 = vmatpush.msra.mxu0 0.0
    %1405 = vmatpush.msra.mxu0 0.0
    %1406 = vmatpush.msra.mxu0 0.0
    %1407 = vmatpush.msra.mxu0 0.0
    %1408 = vmatpush.msra.mxu0 0.0
    %1409 = vmatpush.msra.mxu0 0.0
    %1410 = vmatpush.msra.mxu0 0.0
    %1411 = vmatpush.msra.mxu0 0.0
    %1412 = vmatpush.msra.mxu0 0.0
    %1413 = vmatpush.msra.mxu0 0.0
    %1414 = vmatpush.msra.mxu0 0.0
    %1415 = vmatpush.msra.mxu0 %v475
    %1416 = vmatpush.msra.mxu0 %v474
    %1417 = vmatpush.msra.mxu0 %v473
    %1418 = vmatpush.msra.mxu0 %v472
    %1419 = vmatmul.f32.gmra.mxu0 %v1401
    %v1420 = vpop.f32.mrf.mxu0
    %v1421 = vadd.f32 %v505, %v1420
    %1422 = vdwg.mxu0
    %v1423 = vadd.f32 %v368, %v1396
    %v1424 = vxor.u32 %v1423, 2147483648
    %v1425 = vmul.f32 %v1424, 1.442695
    %v1426 = vpow.pop %v1425
    %v1427 = vadd.f32 %v1426, 1.0
    %v1428 = vrcp.pop %v1427
    %v1429 = vmul.f32 %v1427, %v1428
    %v1430 = vsub.f32 1.0, %v1429
    %v1431 = vmul.f32 %v1428, %v1430
    %v1432 = vadd.f32 %v1428, %v1431
    %vm1433 = vweird.f32 %v1427
    %vm1434 = vweird.f32 %v1428
    %vm1435 = vmor %vm1433, %vm1434
    %v1436 = vsel %vm1435, %v1428, %v1432
    %v1437 = vand.u32 2147483647, %v1427
    %vm1438 = vcmp.eq.f32.partialorder %v1437, 8.507059e+37
    %v1439 = vand.u32 %v1427, 2147483648
    %v1440 = vor.u32 1.1754944e-38, %v1439
    %v1441 = vsel %vm1438, %v1440, %v1436
    %v1442 = vmul.f32 1.0, %v1441
    %1444 = vrot.lane.b32.xlu0 %v1396, 64
    %v1445 = vpop.permute.xlu0 %1444
    %v1447 = vmul.f32 %v1442, %v1445
    %1449 = vrot.lane.b32.xlu0 %v1447, 64
    %v1450 = vpop.permute.xlu0 %1449
    %v1452 = vadd.f32 %v368, %v1450
    %v1453 = vtanh.pop %v1452
    %v1454 = vsub.f32 1.0, %v1442
    %1456 = vrot.lane.b32.xlu0 %v1453, 96
    %v1457 = vpop.permute.xlu0 %1456
    %v1459 = vmul.f32 %v1454, %v1457
    %v1460 = vmul.f32 %v1442, %v1333
    %v1461 = vadd.f32 %v1459, %v1460
    %v1462 = vadd.f32 %v444, %v1421
    %v1463 = vxor.u32 %v1462, 2147483648
    %v1464 = vmul.f32 %v1463, 1.442695
    %v1465 = vpow.pop %v1464
    %v1466 = vadd.f32 %v1465, 1.0
    %v1467 = vrcp.pop %v1466
    %v1468 = vmul.f32 %v1466, %v1467
    %v1469 = vsub.f32 1.0, %v1468
    %v1470 = vmul.f32 %v1467, %v1469
    %v1471 = vadd.f32 %v1467, %v1470
    %vm1472 = vweird.f32 %v1466
    %vm1473 = vweird.f32 %v1467
    %vm1474 = vmor %vm1472, %vm1473
    %v1475 = vsel %vm1474, %v1467, %v1471
    %v1476 = vand.u32 2147483647, %v1466
    %vm1477 = vcmp.eq.f32.partialorder %v1476, 8.507059e+37
    %v1478 = vand.u32 %v1466, 2147483648
    %v1479 = vor.u32 1.1754944e-38, %v1478
    %v1480 = vsel %vm1477, %v1479, %v1475
    %v1481 = vmul.f32 1.0, %v1480
    %1483 = vrot.lane.b32.xlu0 %v1421, 64
    %v1484 = vpop.permute.xlu0 %1483
    %v1486 = vmul.f32 %v1481, %v1484
    %1488 = vrot.lane.b32.xlu0 %v1486, 64
    %v1489 = vpop.permute.xlu0 %1488
    %v1491 = vadd.f32 %v444, %v1489
    %v1492 = vtanh.pop %v1491
    %v1493 = vsub.f32 1.0, %v1481
    %1495 = vrot.lane.b32.xlu0 %v1492, 96
    %v1496 = vpop.permute.xlu0 %1495
    %v1498 = vmul.f32 %v1493, %v1496
    %v1499 = vmul.f32 %v1481, %v1372
    %v1500 = vadd.f32 %v1498, %v1499
    %v1501 = vld [vmem:[%s10] sm:$0xff]
    %v1502 = vld [vmem:[%s10 + $0x8] sm:$0xff]
    %v1503 = vld [vmem:[%s10 + $0x10] sm:$0xff]
    %v1504 = vld [vmem:[%s10 + $0x18] sm:$0xff]
    %v1505 = vld [vmem:[%s10 + $0x20] sm:$0xff]
    %v1506 = vld [vmem:[%s10 + $0x28] sm:$0xff]
    %v1507 = vld [vmem:[%s10 + $0x30] sm:$0xff]
    %v1508 = vld [vmem:[%s10 + $0x38] sm:$0xff]
    %1510 = vrot.lane.b32.xlu0 %v1500, 96
    %v1511 = vpop.permute.xlu0 %1510
    %v1512 = vsel %vm480, %v1511, 0
    %1514 = vmatpush.msra.mxu0 0.0
    %1515 = vmatpush.msra.mxu0 0.0
    %1516 = vmatpush.msra.mxu0 0.0
    %1517 = vmatpush.msra.mxu0 0.0
    %1518 = vmatpush.msra.mxu0 0.0
    %1519 = vmatpush.msra.mxu0 0.0
    %1520 = vmatpush.msra.mxu0 0.0
    %1521 = vmatpush.msra.mxu0 0.0
    %1522 = vmatpush.msra.mxu0 0.0
    %1523 = vmatpush.msra.mxu0 0.0
    %1524 = vmatpush.msra.mxu0 0.0
    %1525 = vmatpush.msra.mxu0 0.0
    %1526 = vmatpush.msra.mxu0 %v1508
    %1527 = vmatpush.msra.mxu0 %v1507
    %1528 = vmatpush.msra.mxu0 %v1506
    %1529 = vmatpush.msra.mxu0 %v1505
    %1530 = vmatmul.f32.gmra.mxu0 %v1512
    %v1531 = vpop.f32.mrf.mxu0
    %v1532 = vadd.f32 0.0, %v1531
    %1533 = vmatmul.f32.gmra.mxu0 %v1401
    %v1534 = vpop.f32.mrf.mxu0
    %v1535 = vadd.f32 0.0, %v1534
    %1536 = vmatmul.f32.gmra.mxu0 %v1273
    %v1537 = vpop.f32.mrf.mxu0
    %v1538 = vadd.f32 0.0, %v1537
    %1539 = vmatmul.f32.gmra.mxu0 %v1145
    %v1540 = vpop.f32.mrf.mxu0
    %v1541 = vadd.f32 0.0, %v1540
    %1542 = vmatmul.f32.gmra.mxu0 %v1017
    %v1543 = vpop.f32.mrf.mxu0
    %v1544 = vadd.f32 0.0, %v1543
    %1545 = vmatmul.f32.gmra.mxu0 %v889
    %v1546 = vpop.f32.mrf.mxu0
    %v1547 = vadd.f32 0.0, %v1546
    %1548 = vmatmul.f32.gmra.mxu0 %v761
    %v1549 = vpop.f32.mrf.mxu0
    %v1550 = vadd.f32 0.0, %v1549
    %1551 = vmatmul.f32.gmra.mxu0 %v633
    %v1552 = vpop.f32.mrf.mxu0
    %v1553 = vadd.f32 0.0, %v1552
    %1554 = vdwg.mxu0
    %1556 = vrot.lane.b32.xlu0 %v1461, 96
    %v1557 = vpop.permute.xlu0 %1556
    %v1558 = vsel %vm480, %v1557, 0
    %1560 = vmatpush.msra.mxu0 0.0
    %1561 = vmatpush.msra.mxu0 0.0
    %1562 = vmatpush.msra.mxu0 0.0
    %1563 = vmatpush.msra.mxu0 0.0
    %1564 = vmatpush.msra.mxu0 0.0
    %1565 = vmatpush.msra.mxu0 0.0
    %1566 = vmatpush.msra.mxu0 0.0
    %1567 = vmatpush.msra.mxu0 0.0
    %1568 = vmatpush.msra.mxu0 0.0
    %1569 = vmatpush.msra.mxu0 0.0
    %1570 = vmatpush.msra.mxu0 0.0
    %1571 = vmatpush.msra.mxu0 0.0
    %1572 = vmatpush.msra.mxu0 %v1504
    %1573 = vmatpush.msra.mxu0 %v1503
    %1574 = vmatpush.msra.mxu0 %v1502
    %1575 = vmatpush.msra.mxu0 %v1501
    %1576 = vmatmul.f32.gmra.mxu0 %v608
    %v1577 = vpop.f32.mrf.mxu0
    %v1578 = vadd.f32 %v1532, %v1577
    %1579 = vmatmul.f32.gmra.mxu0 %v736
    %v1580 = vpop.f32.mrf.mxu0
    %v1581 = vadd.f32 %v1535, %v1580
    %1582 = vmatmul.f32.gmra.mxu0 %v864
    %v1583 = vpop.f32.mrf.mxu0
    %v1584 = vadd.f32 %v1538, %v1583
    %1585 = vmatmul.f32.gmra.mxu0 %v992
    %v1586 = vpop.f32.mrf.mxu0
    %v1587 = vadd.f32 %v1541, %v1586
    %1588 = vmatmul.f32.gmra.mxu0 %v1120
    %v1589 = vpop.f32.mrf.mxu0
    %v1590 = vadd.f32 %v1544, %v1589
    %1591 = vmatmul.f32.gmra.mxu0 %v1248
    %v1592 = vpop.f32.mrf.mxu0
    %v1593 = vadd.f32 %v1547, %v1592
    %1594 = vmatmul.f32.gmra.mxu0 %v1376
    %v1595 = vpop.f32.mrf.mxu0
    %v1596 = vadd.f32 %v1550, %v1595
    %1597 = vmatmul.f32.gmra.mxu0 %v1558
    %v1598 = vpop.f32.mrf.mxu0
    %v1599 = vadd.f32 %v1553, %v1598
    %1600 = vdwg.mxu0
    %v1601 = vmax.f32 %v1578, 0.0
    %v1602 = vmax.f32 %v1581, 0.0
    %v1603 = vmax.f32 %v1584, 0.0
    %v1604 = vmax.f32 %v1587, 0.0
    %v1605 = vmax.f32 %v1590, 0.0
    %v1606 = vmax.f32 %v1593, 0.0
    %v1607 = vmax.f32 %v1596, 0.0
    %v1608 = vmax.f32 %v1599, 0.0
    %v1609 = vld [vmem:[#allocation10] sm:$0xff]
    %v1610 = vld [vmem:[#allocation10 + $0x8] sm:$0xff]
    %v1611 = vld [vmem:[#allocation10 + $0x10] sm:$0xff]
    %v1612 = vld [vmem:[#allocation10 + $0x18] sm:$0xff]
    %v1613 = vld [vmem:[%s12] sm:$0x1]
    %v1615 = vperm.slane %v1613, 0
    %v1618 = vsel %vm480, %v1601, 0
    %v1621 = vsel %vm480, %v1602, 0
    %v1624 = vsel %vm480, %v1603, 0
    %v1627 = vsel %vm480, %v1604, 0
    %v1630 = vsel %vm480, %v1605, 0
    %v1633 = vsel %vm480, %v1606, 0
    %v1636 = vsel %vm480, %v1607, 0
    %v1639 = vsel %vm480, %v1608, 0
    %1641 = vmatpush.msra.mxu0 0.0
    %1642 = vmatpush.msra.mxu0 0.0
    %1643 = vmatpush.msra.mxu0 0.0
    %1644 = vmatpush.msra.mxu0 0.0
    %1645 = vmatpush.msra.mxu0 0.0
    %1646 = vmatpush.msra.mxu0 0.0
    %1647 = vmatpush.msra.mxu0 0.0
    %1648 = vmatpush.msra.mxu0 0.0
    %1649 = vmatpush.msra.mxu0 0.0
    %1650 = vmatpush.msra.mxu0 0.0
    %1651 = vmatpush.msra.mxu0 0.0
    %1652 = vmatpush.msra.mxu0 0.0
    %1653 = vmatpush.msra.mxu0 %v1612
    %1654 = vmatpush.msra.mxu0 %v1611
    %1655 = vmatpush.msra.mxu0 %v1610
    %1656 = vmatpush.msra.mxu0 %v1609
    %1657 = vmatmul.f32.gmra.mxu0 %v1618
    %v1658 = vpop.f32.mrf.mxu0
    %v1659 = vadd.f32 %v1615, %v1658
    %1660 = vmatmul.f32.gmra.mxu0 %v1621
    %v1661 = vpop.f32.mrf.mxu0
    %v1662 = vadd.f32 %v1615, %v1661
    %1663 = vmatmul.f32.gmra.mxu0 %v1624
    %v1664 = vpop.f32.mrf.mxu0
    %v1665 = vadd.f32 %v1615, %v1664
    %1666 = vmatmul.f32.gmra.mxu0 %v1627
    %v1667 = vpop.f32.mrf.mxu0
    %v1668 = vadd.f32 %v1615, %v1667
    %1669 = vmatmul.f32.gmra.mxu0 %v1630
    %v1670 = vpop.f32.mrf.mxu0
    %v1671 = vadd.f32 %v1615, %v1670
    %1672 = vmatmul.f32.gmra.mxu0 %v1633
    %v1673 = vpop.f32.mrf.mxu0
    %v1674 = vadd.f32 %v1615, %v1673
    %1675 = vmatmul.f32.gmra.mxu0 %v1636
    %v1676 = vpop.f32.mrf.mxu0
    %v1677 = vadd.f32 %v1615, %v1676
    %1678 = vmatmul.f32.gmra.mxu0 %v1639
    %v1679 = vpop.f32.mrf.mxu0
    %v1680 = vadd.f32 %v1615, %v1679
    %1681 = vdwg.mxu0
    %1682 = vst.msk [vmem:[#allocation2] sm:$0xff] %vm480, %v1659
    %1683 = vst.msk [vmem:[#allocation2 + $0x8] sm:$0xff] %vm480, %v1662
    %1684 = vst.msk [vmem:[#allocation2 + $0x10] sm:$0xff] %vm480, %v1665
    %1685 = vst.msk [vmem:[#allocation2 + $0x18] sm:$0xff] %vm480, %v1668
    %1686 = vst.msk [vmem:[#allocation2 + $0x20] sm:$0xff] %vm480, %v1671
    %1687 = vst.msk [vmem:[#allocation2 + $0x28] sm:$0xff] %vm480, %v1674
    %1688 = vst.msk [vmem:[#allocation2 + $0x30] sm:$0xff] %vm480, %v1677
    %1689 = vst.msk [vmem:[#allocation2 + $0x38] sm:$0xff] %vm480, %v1680
    %1690 = vrot.lane.b32.xlu0 %v1601, 96
    %v1691 = vpop.permute.xlu0 %1690
    %1692 = vrot.lane.b32.xlu0 %v1602, 96
    %v1693 = vpop.permute.xlu0 %1692
    %1694 = vrot.lane.b32.xlu0 %v1603, 96
    %v1695 = vpop.permute.xlu0 %1694
    %1696 = vrot.lane.b32.xlu0 %v1604, 96
    %v1697 = vpop.permute.xlu0 %1696
    %1698 = vrot.lane.b32.xlu0 %v1605, 96
    %v1699 = vpop.permute.xlu0 %1698
    %1700 = vrot.lane.b32.xlu0 %v1606, 96
    %v1701 = vpop.permute.xlu0 %1700
    %1702 = vrot.lane.b32.xlu0 %v1607, 96
    %v1703 = vpop.permute.xlu0 %1702
    %1704 = vrot.lane.b32.xlu0 %v1608, 96
    %v1705 = vpop.permute.xlu0 %1704
    %1714 = vst.msk [vmem:[#allocation3] sm:$0xff] %vm480, %v1691
    %1715 = vst.msk [vmem:[#allocation3 + $0x8] sm:$0xff] %vm480, %v1693
    %1716 = vst.msk [vmem:[#allocation3 + $0x10] sm:$0xff] %vm480, %v1695
    %1717 = vst.msk [vmem:[#allocation3 + $0x18] sm:$0xff] %vm480, %v1697
    %1718 = vst.msk [vmem:[#allocation3 + $0x20] sm:$0xff] %vm480, %v1699
    %1719 = vst.msk [vmem:[#allocation3 + $0x28] sm:$0xff] %vm480, %v1701
    %1720 = vst.msk [vmem:[#allocation3 + $0x30] sm:$0xff] %vm480, %v1703
    %1721 = vst.msk [vmem:[#allocation3 + $0x38] sm:$0xff] %vm480, %v1705
    %v1722 = vld [vmem:[#allocation2] ss:$8 sm:$0xf]
    %v1723 = vld [vmem:[#allocation2] ss:$8 sm:$0xf0]
    %v1724 = vor.u32 %v1722, %v1723
    %v1725 = vld [vmem:[#allocation3] ss:$8 sm:$0xf]
    %v1726 = vld [vmem:[#allocation3] ss:$8 sm:$0xf0]
    %v1727 = vor.u32 %v1725, %v1726
    %v1729 = vsel %vm480, %v1724, 0
    %v1732 = vsel %vm480, %v1727, 0
    %1734 = vmatpush.xpose.msra.mxu0 0.0
    %1735 = vmatpush.xpose.msra.mxu0 0.0
    %1736 = vmatpush.xpose.msra.mxu0 0.0
    %1737 = vmatpush.xpose.msra.mxu0 0.0
    %1738 = vmatpush.xpose.msra.mxu0 0.0
    %1739 = vmatpush.xpose.msra.mxu0 0.0
    %1740 = vmatpush.xpose.msra.mxu0 0.0
    %1741 = vmatpush.xpose.msra.mxu0 0.0
    %1742 = vmatpush.xpose.msra.mxu0 0.0
    %1743 = vmatpush.xpose.msra.mxu0 0.0
    %1744 = vmatpush.xpose.msra.mxu0 0.0
    %1745 = vmatpush.xpose.msra.mxu0 0.0
    %1746 = vmatpush.xpose.msra.mxu0 0.0
    %1747 = vmatpush.xpose.msra.mxu0 0.0
    %1748 = vmatpush.xpose.msra.mxu0 0.0
    %1749 = vmatpush.xpose.msra.mxu0 %v1732
    %1750 = vmatmul.f32.gmra.mxu0 %v1729
    %v1751 = vpop.f32.mrf.mxu0
    %v1752 = vadd.f32 0.0, %v1751
    %1753 = vdwg.mxu0
    %vm1754 = vcmask 64512
    %v1755 = vsel %vm1754, %v1752, 0.0
    %1756 = vst [vmem:[#allocation12] sm:$0xff] %v1755
    %s1757 = scalar_lea.vmem [#allocation2], 1
    %v1758 = vld [vmem:[%s1757] ss:$8 sm:$0xf]
    %v1759 = vld [vmem:[%s1757] ss:$8 sm:$0xf0]
    %v1760 = vor.u32 %v1758, %v1759
    %s1761 = scalar_lea.vmem [#allocation3], 1
    %v1762 = vld [vmem:[%s1761] ss:$8 sm:$0xf]
    %v1763 = vld [vmem:[%s1761] ss:$8 sm:$0xf0]
    %v1764 = vor.u32 %v1762, %v1763
    %v1766 = vsel %vm480, %v1760, 0
    %v1769 = vsel %vm480, %v1764, 0
    %1771 = vmatpush.xpose.msra.mxu0 0.0
    %1772 = vmatpush.xpose.msra.mxu0 0.0
    %1773 = vmatpush.xpose.msra.mxu0 0.0
    %1774 = vmatpush.xpose.msra.mxu0 0.0
    %1775 = vmatpush.xpose.msra.mxu0 0.0
    %1776 = vmatpush.xpose.msra.mxu0 0.0
    %1777 = vmatpush.xpose.msra.mxu0 0.0
    %1778 = vmatpush.xpose.msra.mxu0 0.0
    %1779 = vmatpush.xpose.msra.mxu0 0.0
    %1780 = vmatpush.xpose.msra.mxu0 0.0
    %1781 = vmatpush.xpose.msra.mxu0 0.0
    %1782 = vmatpush.xpose.msra.mxu0 0.0
    %1783 = vmatpush.xpose.msra.mxu0 0.0
    %1784 = vmatpush.xpose.msra.mxu0 0.0
    %1785 = vmatpush.xpose.msra.mxu0 0.0
    %1786 = vmatpush.xpose.msra.mxu0 %v1769
    %1787 = vmatmul.f32.gmra.mxu0 %v1766
    %v1788 = vpop.f32.mrf.mxu0
    %v1789 = vadd.f32 0.0, %v1788
    %1790 = vdwg.mxu0
    %v1791 = vsel %vm1754, %v1789, 0.0
    %s1792 = scalar_lea.vmem [#allocation12], 8
    %1793 = vst [vmem:[%s1792] sm:$0xff] %v1791
    // Predicated region
    $region70: #{_forward_impl.1} parent=1 // pred_check
      _
    $region71: #{_forward_impl.1} parent=1 // pred_check_branch
      %1795 = sbr.rel (0) target = $region73
    $region72: #{_forward_impl.1} parent=1 // pred_region
      %1797 = vsyncadd [#allocation6], 0
      %s1798 = sshll.u32 [#allocation12], 4
      %s1799 = int_to_ptr.vmem [resolvable:$true] %s1798
      %s1800 = sshll.u32 %s13, 4
      %s1801 = int_to_ptr.hbm [resolvable:$true] %s1800
      %1806 = dma.vmem_to_hbm [thread:$0]  %s1799, 256, %s1801, [#allocation6], 128, 128, 8
    $region73: #{_forward_impl.1} parent=1 // pred_fallthru
      _
    // Predicated region
    $region74: #{_forward_impl.1} parent=1 // pred_check
      _
    $region75: #{_forward_impl.1} parent=1 // pred_check_branch
      %1808 = sbr.rel (0) target = $region77
    $region76: #{_forward_impl.1} parent=1 // pred_region
      %1810 = dma.done [#allocation6], 256
    $region77: #{_forward_impl.1} parent=1 // pred_fallthru
      _
    %1811 = vsyncpa [#allocation5], 1
    %1812 = vsyncpa [#allocation8], 1
    %1813 = vsyncpa [#allocation11], 1
    %1814 = vsyncpa [#allocation6], 1

</llo_original>
